<compile_context>
chip_gen: v7x
topology: tpu7x:2x2x1
jax: 0.10.0
libtpu: 0.0.40
codegen_flags: <defaults>
</compile_context>

<pallas_src>
import functools

import jax
import jax.numpy as jnp
from jax import lax
from jax.experimental import pallas as pl
from jax.experimental.pallas import tpu as pltpu


# --------------------------------------------------------------------------
# small helpers
# --------------------------------------------------------------------------
def _round_up(x, m):
    return ((x + m - 1) // m) * m


def _pick_tile_div(dim, target):
    """Largest multiple of 8 <= target that divides dim (falls back to dim)."""
    if dim % 8:
        return dim                       # full-dim block is always legal
    t = min(target, dim)
    t -= t % 8
    if t < 8:
        return dim
    while dim % t:
        t -= 8
    return t


def _choose_tm(M, target=512):
    """Pick (tm, Mp). Prefer tm that divides M so no padded rows / no mask."""
    if M % 8 == 0:
        if M <= target:
            return M, M
        t = target - target % 8
        while t >= 64:                    # avoid degenerate tiny tiles
            if M % t == 0:
                return t, M
            t -= 8
    # fallback: pad M up to a multiple of tm and mask in the epilogue
    tm = min(target, _round_up(M, 8))
    return tm, _round_up(M, tm)


def _choose_tk(K, target=512):
    """Pick (tk, Kp). When K fits in one step, don't pad it at all."""
    if K <= target:
        return K, K
    Kp = _round_up(K, 128)
    t = target - target % 128
    while t >= 128:
        if Kp % t == 0:
            return t, Kp
        t -= 128
    return 128, Kp


def _choose_tn(OC, target=512):
    """Pick (tn, OCp). OCp is lane-dense (multiple of 128); tn divides OCp."""
    OCp = _round_up(OC, 128)
    t = min(target, OCp)
    t -= t % 128
    while OCp % t:
        t -= 128
    return t, OCp


_VMEM_LIMIT = 48 * 1024 * 1024           # <= v7x physical 64 MiB, per review


# --------------------------------------------------------------------------
# Pallas kernels
# --------------------------------------------------------------------------
def _gemm_bias_act_kernel(x_ref, w_ref, b_ref, o_ref, *rest,
                          slope, valid_m, with_stats):
    """Tiled GEMM: y = x @ w + b  (+ optional LeakyReLU, + optional per-tile
    per-channel sum / sum-of-squares for a following BatchNorm).

    f32 VMEM accumulation across the K grid axis; bf16 output.  Padded rows
    (>= valid_m) are zeroed so the fused BN statistics stay exact.
    """
    if with_stats:
        sum_ref, sq_ref, acc_ref = rest
    else:
        (acc_ref,) = rest

    @pl.when(pl.program_id(2) == 0)
    def _():
        acc_ref[...] = jnp.zeros_like(acc_ref)

    acc_ref[...] += jnp.dot(x_ref[...], w_ref[...],
                            preferred_element_type=jnp.float32)

    @pl.when(pl.program_id(2) == pl.num_programs(2) - 1)
    def _():
        y = acc_ref[...] + b_ref[...]                  # f32 epilogue (v5e-safe)
        if slope is not None:
            y = jnp.where(y >= 0, y, slope * y)
        if valid_m is not None:
            tm = o_ref.shape[0]
            rows = pl.program_id(0) * tm + lax.broadcasted_iota(
                jnp.int32, (tm, 1), 0)
            y = jnp.where(rows < valid_m, y, 0.0)
        o_ref[...] = y.astype(o_ref.dtype)
        if with_stats:
            ps = jnp.sum(y, axis=0, keepdims=True)            # (1, tn)
            pq = jnp.sum(y * y, axis=0, keepdims=True)
            sum_ref[...] = jnp.broadcast_to(ps, sum_ref.shape)
            sq_ref[...] = jnp.broadcast_to(pq, sq_ref.shape)


def _bn_norm_leaky_kernel(x_ref, scale_ref, shift_ref, o_ref, *, slope):
    """y = x * scale + shift ; LeakyReLU(slope).  bf16 in/out, f32 math."""
    y = x_ref[...].astype(jnp.float32) * scale_ref[...] + shift_ref[...]
    o_ref[...] = jnp.where(y >= 0, y, slope * y).astype(o_ref.dtype)


# --------------------------------------------------------------------------
# Pallas wrappers
# --------------------------------------------------------------------------
def conv_matmul(patches, w2d, bias, *, slope=None, with_stats=False,
                tm_target=512, tk_target=512, tn_target=512):
    """patches (M, K) @ w2d (K, OC) + bias, fused LeakyReLU (slope) or fused
    BatchNorm statistics (with_stats).

    Returns the padded bf16 (Mp, OCp) result (padded rows/cols are zero) and,
    if with_stats, the per-channel f32 sum and sum-of-squares (length OCp).
    """
    M, K = patches.shape
    OC = w2d.shape[1]

    tm, Mp = _choose_tm(M, tm_target)
    tk, Kp = _choose_tk(K, tk_target)
    tn, OCp = _choose_tn(OC, tn_target)

    x = patches
    if Mp != M or Kp != K:
        x = jnp.pad(x, ((0, Mp - M), (0, Kp - K)))
    x = x.astype(jnp.bfloat16)
    w = jnp.pad(w2d, ((0, Kp - K), (0, OCp - OC))).astype(jnp.bfloat16)
    b = jnp.pad(bias, (0, OCp - OC)).reshape(1, OCp).astype(jnp.float32)

    gm, gn, gk = Mp // tm, OCp // tn, Kp // tk
    kernel = functools.partial(_gemm_bias_act_kernel, slope=slope,
                               valid_m=(M if Mp > M else None),
                               with_stats=with_stats)

    if with_stats:
        out_shape = (jax.ShapeDtypeStruct((Mp, OCp), jnp.bfloat16),
                     jax.ShapeDtypeStruct((gm * 8, OCp), jnp.float32),
                     jax.ShapeDtypeStruct((gm * 8, OCp), jnp.float32))
        out_specs = (pl.BlockSpec((tm, tn), lambda i, j, k: (i, j)),
                     pl.BlockSpec((8, tn), lambda i, j, k: (i, j)),
                     pl.BlockSpec((8, tn), lambda i, j, k: (i, j)))
    else:
        out_shape = jax.ShapeDtypeStruct((Mp, OCp), jnp.bfloat16)
        out_specs = pl.BlockSpec((tm, tn), lambda i, j, k: (i, j))

    result = pl.pallas_call(
        kernel,
        out_shape=out_shape,
        grid=(gm, gn, gk),
        in_specs=[
            pl.BlockSpec((tm, tk), lambda i, j, k: (i, k)),
            pl.BlockSpec((tk, tn), lambda i, j, k: (k, j)),
            pl.BlockSpec((1, tn), lambda i, j, k: (0, j)),
        ],
        out_specs=out_specs,
        scratch_shapes=[pltpu.VMEM((tm, tn), jnp.float32)],
        compiler_params=pltpu.CompilerParams(
            dimension_semantics=("parallel", "parallel", "arbitrary"),
            vmem_limit_bytes=_VMEM_LIMIT),
    )(x, w, b)

    if with_stats:
        out, psum, psq = result
        s = psum.reshape(gm, 8, OCp)[:, 0, :].sum(axis=0)     # tiny JAX reduce
        q = psq.reshape(gm, 8, OCp)[:, 0, :].sum(axis=0)
        return out, s, q
    return result


def batchnorm_apply_leaky(x_pad, sums, sumsqs, gamma, beta, valid_m,
                          eps=1e-5, slope=0.2):
    """Training-mode BatchNorm (batch stats over the true M rows) + LeakyReLU.

    Statistics come fused from the conv epilogue; this is a single tiled,
    purely mem-bound normalize pass over the padded bf16 (Mp, Cp) slab.
    """
    Mp, Cp = x_pad.shape
    C = gamma.shape[0]
    g = jnp.pad(gamma, (0, Cp - C), constant_values=1.0)
    bt = jnp.pad(beta, (0, Cp - C))

    mean = sums / valid_m
    var = jnp.maximum(sumsqs / valid_m - mean * mean, 0.0)   # biased (PyTorch BN)
    scale = g * lax.rsqrt(var + eps)
    shift = bt - mean * scale

    # (tm, Cp) blocks, no channel axis: scale/shift fetched once, wide stores.
    tm_target = max(8, min(2048, (4 * 1024 * 1024) // max(Cp * 2, 1)))
    tm = _pick_tile_div(Mp, tm_target)

    kernel = functools.partial(_bn_norm_leaky_kernel, slope=slope)
    return pl.pallas_call(
        kernel,
        out_shape=jax.ShapeDtypeStruct((Mp, Cp), jnp.bfloat16),
        grid=(Mp // tm,),
        in_specs=[
            pl.BlockSpec((tm, Cp), lambda i: (i, 0)),
            pl.BlockSpec((1, Cp), lambda i: (0, 0)),
            pl.BlockSpec((1, Cp), lambda i: (0, 0)),
        ],
        out_specs=pl.BlockSpec((tm, Cp), lambda i: (i, 0)),
        compiler_params=pltpu.CompilerParams(
            dimension_semantics=("parallel",),
            vmem_limit_bytes=_VMEM_LIMIT),
    )(x_pad,
      scale.reshape(1, Cp).astype(jnp.float32),
      shift.reshape(1, Cp).astype(jnp.float32))


# --------------------------------------------------------------------------
# JAX glue: NHWC im2col lowering of Conv2d (fused into the outer jit)
# --------------------------------------------------------------------------
def im2col_nhwc(x_nhwc, kh, kw, stride, pad):
    N, H, W, C = x_nhwc.shape
    xp = jnp.pad(x_nhwc, ((0, 0), (pad, pad), (pad, pad), (0, 0))) if pad else x_nhwc
    OH = (H + 2 * pad - kh) // stride + 1
    OW = (W + 2 * pad - kw) // stride + 1
    cols = []
    for i in range(kh):
        for j in range(kw):
            cols.append(xp[:, i:i + stride * OH:stride, j:j + stride * OW:stride, :])
    # (KH*KW, N, OH, OW, C) -> (N, OH, OW, KH*KW, C) -> (M, KH*KW*C)
    p = jnp.stack(cols, axis=0).transpose(1, 2, 3, 0, 4)
    p = p.reshape(N * OH * OW, kh * kw * C)
    return p, OH, OW


def _weight_to_2d(w):
    """(OC, C, KH, KW) -> (KH*KW*C, OC), matching the im2col column order."""
    OC = w.shape[0]
    return jnp.transpose(w, (2, 3, 1, 0)).reshape(-1, OC)


# --------------------------------------------------------------------------
# DCGAN_D parameters + forward (mirrors the nn.Sequential built in __init__)
# --------------------------------------------------------------------------
def init_dcgan_d(key, isize, nz, nc, ndf, n_extra_layers=0):
    assert isize % 16 == 0, "isize has to be a multiple of 16"

    def conv_params(k, oc, ic, ks):
        k1, k2 = jax.random.split(k)
        bound = 1.0 / float(ic * ks * ks) ** 0.5
        w = jax.random.uniform(k1, (oc, ic, ks, ks), jnp.float32, -bound, bound)
        b = jax.random.uniform(k2, (oc,), jnp.float32, -bound, bound)
        return w, b

    keys = iter(jax.random.split(key, 64))
    configs, params = [], []

    # initial conv(4,2,1) + LeakyReLU(0.2)
    w, b = conv_params(next(keys), ndf, nc, 4)
    configs.append(("conv_leaky", 4, 2, 1))
    params.append(dict(w=w, b=b))
    csize, cndf = isize // 2, ndf

    # extra layers: conv(3,1,1) + BN + LeakyReLU
    for _ in range(n_extra_layers):
        w, b = conv_params(next(keys), cndf, cndf, 3)
        configs.append(("conv_bn_leaky", 3, 1, 1))
        params.append(dict(w=w, b=b,
                           gamma=jnp.ones((cndf,), jnp.float32),
                           beta=jnp.zeros((cndf,), jnp.float32)))

    # pyramid: conv(4,2,1) + BN + LeakyReLU
    while csize >= 8:
        w, b = conv_params(next(keys), cndf * 2, cndf, 4)
        configs.append(("conv_bn_leaky", 4, 2, 1))
        params.append(dict(w=w, b=b,
                           gamma=jnp.ones((cndf * 2,), jnp.float32),
                           beta=jnp.zeros((cndf * 2,), jnp.float32)))
        cndf *= 2
        csize //= 2

    # final conv(4,1,0) -> 1 channel
    w, b = conv_params(next(keys), 1, cndf, 4)
    configs.append(("conv_final", 4, 1, 0))
    params.append(dict(w=w, b=b))
    return tuple(configs), params


@functools.partial(jax.jit, static_argnums=0)
def dcgan_d_forward(configs, params, x_nchw):
    # one transpose to NHWC + bf16 cast; activations stay NHWC bf16 throughout
    x = jnp.transpose(x_nchw, (0, 2, 3, 1)).astype(jnp.bfloat16)

    for (kind, ks, stride, pad), p in zip(configs, params):
        if kind == "conv_final":
            # OC=1 GEMV with a 1x1 spatial output: intentionally plain XLA
            # (a Pallas launch here is >99% idle lanes/MXU).
            N = x.shape[0]
            patches, OH, OW = im2col_nhwc(x, ks, ks, stride, pad)
            out = patches @ _weight_to_2d(p["w"]) + p["b"][None, :]
            x = out.reshape(N, OH, OW, -1)
            continue

        N = x.shape[0]
        OC = p["w"].shape[0]
        patches, OH, OW = im2col_nhwc(x, ks, ks, stride, pad)
        M = patches.shape[0]
        w2d = _weight_to_2d(p["w"])

        if kind == "conv_leaky":
            out_pad = conv_matmul(patches, w2d, p["b"], slope=0.2)
        else:  # conv_bn_leaky: BN stats fused into the conv epilogue
            out_pad, s, q = conv_matmul(patches, w2d, p["b"], with_stats=True)
            out_pad = batchnorm_apply_leaky(out_pad, s, q,
                                            p["gamma"], p["beta"], valid_m=M)

        # compaction slice is a no-op on M (Mp == M whenever tm divides M) and
        # bf16-halved on the padded channels.
        x = out_pad[:M, :OC].reshape(N, OH, OW, OC)

    # PyTorch: output.view(-1, 1)  (final feature map is (N, 1, 1, 1))
    return x.reshape(-1, 1).astype(jnp.float32)


# --------------------------------------------------------------------------
if __name__ == "__main__":
    key = jax.random.PRNGKey(0)
    k_params, k_x = jax.random.split(key)

    # small config consistent with the module: isize multiple of 16
    isize, nz, nc, ndf, n_extra = 16, 32, 4, 8, 1

    configs, params = init_dcgan_d(k_params, isize, nz, nc, ndf,
                                   n_extra_layers=n_extra)
    x = jax.random.normal(k_x, (2, nc, isize, isize), jnp.float32)

    out = dcgan_d_forward(configs, params, x)
    out = jax.block_until_ready(out)
    assert out.shape == (2, 1), out.shape
    assert out.dtype == jnp.float32
    assert bool(jnp.all(jnp.isfinite(out)))
    print("KERNEL_OK")
</pallas_src>

<mosaic_0001>
module attributes {stable_mosaic.version = 11 : i64} {
  func.func @_gemm_bias_act_kernel(%arg0: i32, %arg1: i32, %arg2: i32, %arg3: memref<128x64xbf16, #tpu.memory_space<vmem>>, %arg4: memref<64x128xbf16, #tpu.memory_space<vmem>>, %arg5: memref<1x128xf32, #tpu.memory_space<vmem>>, %arg6: memref<128x128xbf16, #tpu.memory_space<vmem>>, %arg7: memref<128x128xf32, #tpu.memory_space<vmem>>) attributes {dimension_semantics = [#tpu.dimension_semantics<parallel>, #tpu.dimension_semantics<parallel>, #tpu.dimension_semantics<arbitrary>], iteration_bounds = array<i64: 1, 1, 1>, scalar_prefetch = 0 : i64, scratch_operands = 1 : i64, tpu.core_type = #tpu.core_type<tc>, window_params = [{transform_indices = @transform_0, window_bounds = array<i64: 128, 64>}, {transform_indices = @transform_1, window_bounds = array<i64: 64, 128>}, {transform_indices = @transform_2, window_bounds = array<i64: 1, 128>}, {transform_indices = @transform_3, window_bounds = array<i64: 128, 128>}]} {
    %c0_i32 = arith.constant 0 : i32
    %0 = arith.cmpi eq, %arg2, %c0_i32 : i32
    %1 = arith.extui %0 : i1 to i32
    %c0_i32_0 = arith.constant 0 : i32
    %2 = arith.cmpi ne, %1, %c0_i32_0 : i32
    scf.if %2 {
      %cst_10 = arith.constant 0.000000e+00 : f32
      %12 = vector.broadcast %cst_10 : f32 to vector<128x128xf32>
      %c0_11 = arith.constant 0 : index
      %c0_12 = arith.constant 0 : index
      %13 = vector.load %arg7[%c0_11, %c0_12] : memref<128x128xf32, #tpu.memory_space<vmem>>, vector<128x128xf32>
      tpu.vector_store %arg7[%c0_11, %c0_12], %12 {strides = array<i32>} : memref<128x128xf32, #tpu.memory_space<vmem>>, vector<128x128xf32>,
    } else {
    }
    %c0 = arith.constant 0 : index
    %c0_1 = arith.constant 0 : index
    %3 = vector.load %arg7[%c0, %c0_1] : memref<128x128xf32, #tpu.memory_space<vmem>>, vector<128x128xf32>
    %c0_2 = arith.constant 0 : index
    %c0_3 = arith.constant 0 : index
    %4 = vector.load %arg3[%c0_2, %c0_3] : memref<128x64xbf16, #tpu.memory_space<vmem>>, vector<128x64xbf16>
    %c0_4 = arith.constant 0 : index
    %c0_5 = arith.constant 0 : index
    %5 = vector.load %arg4[%c0_4, %c0_5] : memref<64x128xbf16, #tpu.memory_space<vmem>>, vector<64x128xbf16>
    %cst = arith.constant dense<0.000000e+00> : vector<128x128xf32>
    %6 = tpu.matmul %4, %5, %cst {dimension_numbers = #tpu.dot_dimension_numbers<[1], [0], [0], [1], [0, 0, 1, 1], [], []>} : vector<128x64xbf16>, vector<64x128xbf16>, vector<128x128xf32> -> vector<128x128xf32>
    %7 = arith.addf %3, %6 : vector<128x128xf32>
    %c0_6 = arith.constant 0 : index
    %c0_7 = arith.constant 0 : index
    %8 = vector.load %arg7[%c0_6, %c0_7] : memref<128x128xf32, #tpu.memory_space<vmem>>, vector<128x128xf32>
    tpu.vector_store %arg7[%c0_6, %c0_7], %7 {strides = array<i32>} : memref<128x128xf32, #tpu.memory_space<vmem>>, vector<128x128xf32>,
    %c0_i32_8 = arith.constant 0 : i32
    %9 = arith.cmpi eq, %arg2, %c0_i32_8 : i32
    %10 = arith.extui %9 : i1 to i32
    %c0_i32_9 = arith.constant 0 : i32
    %11 = arith.cmpi ne, %10, %c0_i32_9 : i32
    scf.if %11 {
      %c0_10 = arith.constant 0 : index
      %c0_11 = arith.constant 0 : index
      %12 = vector.load %arg7[%c0_10, %c0_11] : memref<128x128xf32, #tpu.memory_space<vmem>>, vector<128x128xf32>
      %c0_12 = arith.constant 0 : index
      %c0_13 = arith.constant 0 : index
      %13 = vector.load %arg5[%c0_12, %c0_13] : memref<1x128xf32, #tpu.memory_space<vmem>>, vector<1x128xf32>
      %14 = vector.broadcast %13 : vector<1x128xf32> to vector<128x128xf32>
      %15 = arith.addf %12, %14 : vector<128x128xf32>
      %cst_14 = arith.constant 0.000000e+00 : f32
      %16 = vector.broadcast %cst_14 : f32 to vector<128x128xf32>
      %17 = arith.cmpf oge, %15, %16 : vector<128x128xf32>
      %cst_15 = arith.constant 2.000000e-01 : f32
      %18 = vector.broadcast %cst_15 : f32 to vector<128x128xf32>
      %19 = arith.mulf %18, %15 : vector<128x128xf32>
      %20 = arith.select %17, %15, %19 : vector<128x128xi1>, vector<128x128xf32>
      %21 = arith.truncf %20 : vector<128x128xf32> to vector<128x128xbf16>
      %c0_16 = arith.constant 0 : index
      %c0_17 = arith.constant 0 : index
      %22 = vector.load %arg6[%c0_16, %c0_17] : memref<128x128xbf16, #tpu.memory_space<vmem>>, vector<128x128xbf16>
      tpu.vector_store %arg6[%c0_16, %c0_17], %21 {strides = array<i32>} : memref<128x128xbf16, #tpu.memory_space<vmem>>, vector<128x128xbf16>,
    } else {
    }
    return
  }
  func.func @transform_0(%arg0: i32, %arg1: i32, %arg2: i32) -> (i32, i32) {
    %c0_i32 = arith.constant 0 : i32
    return %arg0, %arg2 : i32, i32
  }
  func.func @transform_1(%arg0: i32, %arg1: i32, %arg2: i32) -> (i32, i32) {
    %c0_i32 = arith.constant 0 : i32
    return %arg2, %arg1 : i32, i32
  }
  func.func @transform_2(%arg0: i32, %arg1: i32, %arg2: i32) -> (i32, i32) {
    %c0_i32 = arith.constant 0 : i32
    %c0_i32_0 = arith.constant 0 : i32
    return %c0_i32, %arg1 : i32, i32
  }
  func.func @transform_3(%arg0: i32, %arg1: i32, %arg2: i32) -> (i32, i32) {
    %c0_i32 = arith.constant 0 : i32
    return %arg0, %arg1 : i32, i32
  }
}

module attributes {stable_mosaic.version = 11 : i64} {
  func.func @_bn_norm_leaky_kernel(%arg0: i32, %arg1: memref<128x128xbf16, #tpu.memory_space<vmem>>, %arg2: memref<1x128xf32, #tpu.memory_space<vmem>>, %arg3: memref<1x128xf32, #tpu.memory_space<vmem>>, %arg4: memref<128x128xbf16, #tpu.memory_space<vmem>>) attributes {dimension_semantics = [#tpu.dimension_semantics<parallel>], iteration_bounds = array<i64: 1>, scalar_prefetch = 0 : i64, scratch_operands = 0 : i64, tpu.core_type = #tpu.core_type<tc>, window_params = [{transform_indices = @transform_0, window_bounds = array<i64: 128, 128>}, {pipeline_mode = #tpu.pipeline_mode<synchronous>, transform_indices = @transform_1, window_bounds = array<i64: 1, 128>}, {pipeline_mode = #tpu.pipeline_mode<synchronous>, transform_indices = @transform_2, window_bounds = array<i64: 1, 128>}, {transform_indices = @transform_3, window_bounds = array<i64: 128, 128>}]} {
    %c0 = arith.constant 0 : index
    %c0_0 = arith.constant 0 : index
    %0 = vector.load %arg1[%c0, %c0_0] : memref<128x128xbf16, #tpu.memory_space<vmem>>, vector<128x128xbf16>
    %1 = arith.extf %0 : vector<128x128xbf16> to vector<128x128xf32>
    %c0_1 = arith.constant 0 : index
    %c0_2 = arith.constant 0 : index
    %2 = vector.load %arg2[%c0_1, %c0_2] : memref<1x128xf32, #tpu.memory_space<vmem>>, vector<1x128xf32>
    %3 = vector.broadcast %2 : vector<1x128xf32> to vector<128x128xf32>
    %4 = arith.mulf %1, %3 : vector<128x128xf32>
    %c0_3 = arith.constant 0 : index
    %c0_4 = arith.constant 0 : index
    %5 = vector.load %arg3[%c0_3, %c0_4] : memref<1x128xf32, #tpu.memory_space<vmem>>, vector<1x128xf32>
    %6 = vector.broadcast %5 : vector<1x128xf32> to vector<128x128xf32>
    %7 = arith.addf %4, %6 : vector<128x128xf32>
    %cst = arith.constant 0.000000e+00 : f32
    %8 = vector.broadcast %cst : f32 to vector<128x128xf32>
    %9 = arith.cmpf oge, %7, %8 : vector<128x128xf32>
    %cst_5 = arith.constant 2.000000e-01 : f32
    %10 = vector.broadcast %cst_5 : f32 to vector<128x128xf32>
    %11 = arith.mulf %10, %7 : vector<128x128xf32>
    %12 = arith.select %9, %7, %11 : vector<128x128xi1>, vector<128x128xf32>
    %13 = arith.truncf %12 : vector<128x128xf32> to vector<128x128xbf16>
    %c0_6 = arith.constant 0 : index
    %c0_7 = arith.constant 0 : index
    %14 = vector.load %arg4[%c0_6, %c0_7] : memref<128x128xbf16, #tpu.memory_space<vmem>>, vector<128x128xbf16>
    tpu.vector_store %arg4[%c0_6, %c0_7], %13 {strides = array<i32>} : memref<128x128xbf16, #tpu.memory_space<vmem>>, vector<128x128xbf16>,
    return
  }
  func.func @transform_0(%arg0: i32) -> (i32, i32) {
    %c0_i32 = arith.constant 0 : i32
    %c0_i32_0 = arith.constant 0 : i32
    return %arg0, %c0_i32 : i32, i32
  }
  func.func @transform_1(%arg0: i32) -> (i32, i32) {
    %c0_i32 = arith.constant 0 : i32
    %c0_i32_0 = arith.constant 0 : i32
    %c0_i32_1 = arith.constant 0 : i32
    return %c0_i32, %c0_i32_0 : i32, i32
  }
  func.func @transform_2(%arg0: i32) -> (i32, i32) {
    %c0_i32 = arith.constant 0 : i32
    %c0_i32_0 = arith.constant 0 : i32
    %c0_i32_1 = arith.constant 0 : i32
    return %c0_i32, %c0_i32_0 : i32, i32
  }
  func.func @transform_3(%arg0: i32) -> (i32, i32) {
    %c0_i32 = arith.constant 0 : i32
    %c0_i32_0 = arith.constant 0 : i32
    return %arg0, %c0_i32 : i32, i32
  }
}

module attributes {stable_mosaic.version = 11 : i64} {
  func.func @_gemm_bias_act_kernel(%arg0: i32, %arg1: i32, %arg2: i32, %arg3: memref<128x72xbf16, #tpu.memory_space<vmem>>, %arg4: memref<72x128xbf16, #tpu.memory_space<vmem>>, %arg5: memref<1x128xf32, #tpu.memory_space<vmem>>, %arg6: memref<128x128xbf16, #tpu.memory_space<vmem>>, %arg7: memref<8x128xf32, #tpu.memory_space<vmem>>, %arg8: memref<8x128xf32, #tpu.memory_space<vmem>>, %arg9: memref<128x128xf32, #tpu.memory_space<vmem>>) attributes {dimension_semantics = [#tpu.dimension_semantics<parallel>, #tpu.dimension_semantics<parallel>, #tpu.dimension_semantics<arbitrary>], iteration_bounds = array<i64: 1, 1, 1>, scalar_prefetch = 0 : i64, scratch_operands = 1 : i64, tpu.core_type = #tpu.core_type<tc>, window_params = [{transform_indices = @transform_0, window_bounds = array<i64: 128, 72>}, {transform_indices = @transform_1, window_bounds = array<i64: 72, 128>}, {transform_indices = @transform_2, window_bounds = array<i64: 1, 128>}, {transform_indices = @transform_3, window_bounds = array<i64: 128, 128>}, {transform_indices = @transform_4, window_bounds = array<i64: 8, 128>}, {transform_indices = @transform_5, window_bounds = array<i64: 8, 128>}]} {
    %c0_i32 = arith.constant 0 : i32
    %0 = arith.cmpi eq, %arg2, %c0_i32 : i32
    %1 = arith.extui %0 : i1 to i32
    %c0_i32_0 = arith.constant 0 : i32
    %2 = arith.cmpi ne, %1, %c0_i32_0 : i32
    scf.if %2 {
      %cst_10 = arith.constant 0.000000e+00 : f32
      %12 = vector.broadcast %cst_10 : f32 to vector<128x128xf32>
      %c0_11 = arith.constant 0 : index
      %c0_12 = arith.constant 0 : index
      %13 = vector.load %arg9[%c0_11, %c0_12] : memref<128x128xf32, #tpu.memory_space<vmem>>, vector<128x128xf32>
      tpu.vector_store %arg9[%c0_11, %c0_12], %12 {strides = array<i32>} : memref<128x128xf32, #tpu.memory_space<vmem>>, vector<128x128xf32>,
    } else {
    }
    %c0 = arith.constant 0 : index
    %c0_1 = arith.constant 0 : index
    %3 = vector.load %arg9[%c0, %c0_1] : memref<128x128xf32, #tpu.memory_space<vmem>>, vector<128x128xf32>
    %c0_2 = arith.constant 0 : index
    %c0_3 = arith.constant 0 : index
    %4 = vector.load %arg3[%c0_2, %c0_3] : memref<128x72xbf16, #tpu.memory_space<vmem>>, vector<128x72xbf16>
    %c0_4 = arith.constant 0 : index
    %c0_5 = arith.constant 0 : index
    %5 = vector.load %arg4[%c0_4, %c0_5] : memref<72x128xbf16, #tpu.memory_space<vmem>>, vector<72x128xbf16>
    %cst = arith.constant dense<0.000000e+00> : vector<128x128xf32>
    %6 = tpu.matmul %4, %5, %cst {dimension_numbers = #tpu.dot_dimension_numbers<[1], [0], [0], [1], [0, 0, 1, 1], [], []>} : vector<128x72xbf16>, vector<72x128xbf16>, vector<128x128xf32> -> vector<128x128xf32>
    %7 = arith.addf %3, %6 : vector<128x128xf32>
    %c0_6 = arith.constant 0 : index
    %c0_7 = arith.constant 0 : index
    %8 = vector.load %arg9[%c0_6, %c0_7] : memref<128x128xf32, #tpu.memory_space<vmem>>, vector<128x128xf32>
    tpu.vector_store %arg9[%c0_6, %c0_7], %7 {strides = array<i32>} : memref<128x128xf32, #tpu.memory_space<vmem>>, vector<128x128xf32>,
    %c0_i32_8 = arith.constant 0 : i32
    %9 = arith.cmpi eq, %arg2, %c0_i32_8 : i32
    %10 = arith.extui %9 : i1 to i32
    %c0_i32_9 = arith.constant 0 : i32
    %11 = arith.cmpi ne, %10, %c0_i32_9 : i32
    scf.if %11 {
      %c0_10 = arith.constant 0 : index
      %c0_11 = arith.constant 0 : index
      %12 = vector.load %arg9[%c0_10, %c0_11] : memref<128x128xf32, #tpu.memory_space<vmem>>, vector<128x128xf32>
      %c0_12 = arith.constant 0 : index
      %c0_13 = arith.constant 0 : index
      %13 = vector.load %arg5[%c0_12, %c0_13] : memref<1x128xf32, #tpu.memory_space<vmem>>, vector<1x128xf32>
      %14 = vector.broadcast %13 : vector<1x128xf32> to vector<128x128xf32>
      %15 = arith.addf %12, %14 : vector<128x128xf32>
      %16 = arith.truncf %15 : vector<128x128xf32> to vector<128x128xbf16>
      %c0_14 = arith.constant 0 : index
      %c0_15 = arith.constant 0 : index
      %17 = vector.load %arg6[%c0_14, %c0_15] : memref<128x128xbf16, #tpu.memory_space<vmem>>, vector<128x128xbf16>
      tpu.vector_store %arg6[%c0_14, %c0_15], %16 {strides = array<i32>} : memref<128x128xbf16, #tpu.memory_space<vmem>>, vector<128x128xbf16>,
      %cst_16 = arith.constant dense<0.000000e+00> : vector<128xf32>
      %18 = vector.multi_reduction <add>, %15, %cst_16 [0] : vector<128x128xf32> to vector<128xf32>
      %19 = vector.shape_cast %18 : vector<128xf32> to vector<1x128xf32>
      %20 = arith.mulf %15, %15 : vector<128x128xf32>
      %cst_17 = arith.constant dense<0.000000e+00> : vector<128xf32>
      %21 = vector.multi_reduction <add>, %20, %cst_17 [0] : vector<128x128xf32> to vector<128xf32>
      %22 = vector.shape_cast %21 : vector<128xf32> to vector<1x128xf32>
      %23 = vector.shape_cast %19 : vector<1x128xf32> to vector<1x128xf32>
      %24 = vector.broadcast %23 : vector<1x128xf32> to vector<8x128xf32>
      %c0_18 = arith.constant 0 : index
      %c0_19 = arith.constant 0 : index
      %25 = vector.load %arg7[%c0_18, %c0_19] : memref<8x128xf32, #tpu.memory_space<vmem>>, vector<8x128xf32>
      tpu.vector_store %arg7[%c0_18, %c0_19], %24 {strides = array<i32>} : memref<8x128xf32, #tpu.memory_space<vmem>>, vector<8x128xf32>,
      %26 = vector.shape_cast %22 : vector<1x128xf32> to vector<1x128xf32>
      %27 = vector.broadcast %26 : vector<1x128xf32> to vector<8x128xf32>
      %c0_20 = arith.constant 0 : index
      %c0_21 = arith.constant 0 : index
      %28 = vector.load %arg8[%c0_20, %c0_21] : memref<8x128xf32, #tpu.memory_space<vmem>>, vector<8x128xf32>
      tpu.vector_store %arg8[%c0_20, %c0_21], %27 {strides = array<i32>} : memref<8x128xf32, #tpu.memory_space<vmem>>, vector<8x128xf32>,
    } else {
    }
    return
  }
  func.func @transform_0(%arg0: i32, %arg1: i32, %arg2: i32) -> (i32, i32) {
    %c0_i32 = arith.constant 0 : i32
    return %arg0, %arg2 : i32, i32
  }
  func.func @transform_1(%arg0: i32, %arg1: i32, %arg2: i32) -> (i32, i32) {
    %c0_i32 = arith.constant 0 : i32
    return %arg2, %arg1 : i32, i32
  }
  func.func @transform_2(%arg0: i32, %arg1: i32, %arg2: i32) -> (i32, i32) {
    %c0_i32 = arith.constant 0 : i32
    %c0_i32_0 = arith.constant 0 : i32
    return %c0_i32, %arg1 : i32, i32
  }
  func.func @transform_3(%arg0: i32, %arg1: i32, %arg2: i32) -> (i32, i32) {
    %c0_i32 = arith.constant 0 : i32
    return %arg0, %arg1 : i32, i32
  }
  func.func @transform_4(%arg0: i32, %arg1: i32, %arg2: i32) -> (i32, i32) {
    %c0_i32 = arith.constant 0 : i32
    return %arg0, %arg1 : i32, i32
  }
  func.func @transform_5(%arg0: i32, %arg1: i32, %arg2: i32) -> (i32, i32) {
    %c0_i32 = arith.constant 0 : i32
    return %arg0, %arg1 : i32, i32
  }
}

module attributes {stable_mosaic.version = 11 : i64} {
  func.func @_bn_norm_leaky_kernel(%arg0: i32, %arg1: memref<32x128xbf16, #tpu.memory_space<vmem>>, %arg2: memref<1x128xf32, #tpu.memory_space<vmem>>, %arg3: memref<1x128xf32, #tpu.memory_space<vmem>>, %arg4: memref<32x128xbf16, #tpu.memory_space<vmem>>) attributes {dimension_semantics = [#tpu.dimension_semantics<parallel>], iteration_bounds = array<i64: 1>, scalar_prefetch = 0 : i64, scratch_operands = 0 : i64, tpu.core_type = #tpu.core_type<tc>, window_params = [{transform_indices = @transform_0, window_bounds = array<i64: 32, 128>}, {pipeline_mode = #tpu.pipeline_mode<synchronous>, transform_indices = @transform_1, window_bounds = array<i64: 1, 128>}, {pipeline_mode = #tpu.pipeline_mode<synchronous>, transform_indices = @transform_2, window_bounds = array<i64: 1, 128>}, {transform_indices = @transform_3, window_bounds = array<i64: 32, 128>}]} {
    %c0 = arith.constant 0 : index
    %c0_0 = arith.constant 0 : index
    %0 = vector.load %arg1[%c0, %c0_0] : memref<32x128xbf16, #tpu.memory_space<vmem>>, vector<32x128xbf16>
    %1 = arith.extf %0 : vector<32x128xbf16> to vector<32x128xf32>
    %c0_1 = arith.constant 0 : index
    %c0_2 = arith.constant 0 : index
    %2 = vector.load %arg2[%c0_1, %c0_2] : memref<1x128xf32, #tpu.memory_space<vmem>>, vector<1x128xf32>
    %3 = vector.broadcast %2 : vector<1x128xf32> to vector<32x128xf32>
    %4 = arith.mulf %1, %3 : vector<32x128xf32>
    %c0_3 = arith.constant 0 : index
    %c0_4 = arith.constant 0 : index
    %5 = vector.load %arg3[%c0_3, %c0_4] : memref<1x128xf32, #tpu.memory_space<vmem>>, vector<1x128xf32>
    %6 = vector.broadcast %5 : vector<1x128xf32> to vector<32x128xf32>
    %7 = arith.addf %4, %6 : vector<32x128xf32>
    %cst = arith.constant 0.000000e+00 : f32
    %8 = vector.broadcast %cst : f32 to vector<32x128xf32>
    %9 = arith.cmpf oge, %7, %8 : vector<32x128xf32>
    %cst_5 = arith.constant 2.000000e-01 : f32
    %10 = vector.broadcast %cst_5 : f32 to vector<32x128xf32>
    %11 = arith.mulf %10, %7 : vector<32x128xf32>
    %12 = arith.select %9, %7, %11 : vector<32x128xi1>, vector<32x128xf32>
    %13 = arith.truncf %12 : vector<32x128xf32> to vector<32x128xbf16>
    %c0_6 = arith.constant 0 : index
    %c0_7 = arith.constant 0 : index
    %14 = vector.load %arg4[%c0_6, %c0_7] : memref<32x128xbf16, #tpu.memory_space<vmem>>, vector<32x128xbf16>
    tpu.vector_store %arg4[%c0_6, %c0_7], %13 {strides = array<i32>} : memref<32x128xbf16, #tpu.memory_space<vmem>>, vector<32x128xbf16>,
    return
  }
  func.func @transform_0(%arg0: i32) -> (i32, i32) {
    %c0_i32 = arith.constant 0 : i32
    %c0_i32_0 = arith.constant 0 : i32
    return %arg0, %c0_i32 : i32, i32
  }
  func.func @transform_1(%arg0: i32) -> (i32, i32) {
    %c0_i32 = arith.constant 0 : i32
    %c0_i32_0 = arith.constant 0 : i32
    %c0_i32_1 = arith.constant 0 : i32
    return %c0_i32, %c0_i32_0 : i32, i32
  }
  func.func @transform_2(%arg0: i32) -> (i32, i32) {
    %c0_i32 = arith.constant 0 : i32
    %c0_i32_0 = arith.constant 0 : i32
    %c0_i32_1 = arith.constant 0 : i32
    return %c0_i32, %c0_i32_0 : i32, i32
  }
  func.func @transform_3(%arg0: i32) -> (i32, i32) {
    %c0_i32 = arith.constant 0 : i32
    %c0_i32_0 = arith.constant 0 : i32
    return %arg0, %c0_i32 : i32, i32
  }
}

module attributes {stable_mosaic.version = 11 : i64} {
  func.func @_gemm_bias_act_kernel(%arg0: i32, %arg1: i32, %arg2: i32, %arg3: memref<32x128xbf16, #tpu.memory_space<vmem>>, %arg4: memref<128x128xbf16, #tpu.memory_space<vmem>>, %arg5: memref<1x128xf32, #tpu.memory_space<vmem>>, %arg6: memref<32x128xbf16, #tpu.memory_space<vmem>>, %arg7: memref<8x128xf32, #tpu.memory_space<vmem>>, %arg8: memref<8x128xf32, #tpu.memory_space<vmem>>, %arg9: memref<32x128xf32, #tpu.memory_space<vmem>>) attributes {dimension_semantics = [#tpu.dimension_semantics<parallel>, #tpu.dimension_semantics<parallel>, #tpu.dimension_semantics<arbitrary>], iteration_bounds = array<i64: 1, 1, 1>, scalar_prefetch = 0 : i64, scratch_operands = 1 : i64, tpu.core_type = #tpu.core_type<tc>, window_params = [{transform_indices = @transform_0, window_bounds = array<i64: 32, 128>}, {transform_indices = @transform_1, window_bounds = array<i64: 128, 128>}, {transform_indices = @transform_2, window_bounds = array<i64: 1, 128>}, {transform_indices = @transform_3, window_bounds = array<i64: 32, 128>}, {transform_indices = @transform_4, window_bounds = array<i64: 8, 128>}, {transform_indices = @transform_5, window_bounds = array<i64: 8, 128>}]} {
    %c0_i32 = arith.constant 0 : i32
    %0 = arith.cmpi eq, %arg2, %c0_i32 : i32
    %1 = arith.extui %0 : i1 to i32
    %c0_i32_0 = arith.constant 0 : i32
    %2 = arith.cmpi ne, %1, %c0_i32_0 : i32
    scf.if %2 {
      %cst_10 = arith.constant 0.000000e+00 : f32
      %12 = vector.broadcast %cst_10 : f32 to vector<32x128xf32>
      %c0_11 = arith.constant 0 : index
      %c0_12 = arith.constant 0 : index
      %13 = vector.load %arg9[%c0_11, %c0_12] : memref<32x128xf32, #tpu.memory_space<vmem>>, vector<32x128xf32>
      tpu.vector_store %arg9[%c0_11, %c0_12], %12 {strides = array<i32>} : memref<32x128xf32, #tpu.memory_space<vmem>>, vector<32x128xf32>,
    } else {
    }
    %c0 = arith.constant 0 : index
    %c0_1 = arith.constant 0 : index
    %3 = vector.load %arg9[%c0, %c0_1] : memref<32x128xf32, #tpu.memory_space<vmem>>, vector<32x128xf32>
    %c0_2 = arith.constant 0 : index
    %c0_3 = arith.constant 0 : index
    %4 = vector.load %arg3[%c0_2, %c0_3] : memref<32x128xbf16, #tpu.memory_space<vmem>>, vector<32x128xbf16>
    %c0_4 = arith.constant 0 : index
    %c0_5 = arith.constant 0 : index
    %5 = vector.load %arg4[%c0_4, %c0_5] : memref<128x128xbf16, #tpu.memory_space<vmem>>, vector<128x128xbf16>
    %cst = arith.constant dense<0.000000e+00> : vector<32x128xf32>
    %6 = tpu.matmul %4, %5, %cst {dimension_numbers = #tpu.dot_dimension_numbers<[1], [0], [0], [1], [0, 0, 1, 1], [], []>} : vector<32x128xbf16>, vector<128x128xbf16>, vector<32x128xf32> -> vector<32x128xf32>
    %7 = arith.addf %3, %6 : vector<32x128xf32>
    %c0_6 = arith.constant 0 : index
    %c0_7 = arith.constant 0 : index
    %8 = vector.load %arg9[%c0_6, %c0_7] : memref<32x128xf32, #tpu.memory_space<vmem>>, vector<32x128xf32>
    tpu.vector_store %arg9[%c0_6, %c0_7], %7 {strides = array<i32>} : memref<32x128xf32, #tpu.memory_space<vmem>>, vector<32x128xf32>,
    %c0_i32_8 = arith.constant 0 : i32
    %9 = arith.cmpi eq, %arg2, %c0_i32_8 : i32
    %10 = arith.extui %9 : i1 to i32
    %c0_i32_9 = arith.constant 0 : i32
    %11 = arith.cmpi ne, %10, %c0_i32_9 : i32
    scf.if %11 {
      %c0_10 = arith.constant 0 : index
      %c0_11 = arith.constant 0 : index
      %12 = vector.load %arg9[%c0_10, %c0_11] : memref<32x128xf32, #tpu.memory_space<vmem>>, vector<32x128xf32>
      %c0_12 = arith.constant 0 : index
      %c0_13 = arith.constant 0 : index
      %13 = vector.load %arg5[%c0_12, %c0_13] : memref<1x128xf32, #tpu.memory_space<vmem>>, vector<1x128xf32>
      %14 = vector.broadcast %13 : vector<1x128xf32> to vector<32x128xf32>
      %15 = arith.addf %12, %14 : vector<32x128xf32>
      %16 = arith.truncf %15 : vector<32x128xf32> to vector<32x128xbf16>
      %c0_14 = arith.constant 0 : index
      %c0_15 = arith.constant 0 : index
      %17 = vector.load %arg6[%c0_14, %c0_15] : memref<32x128xbf16, #tpu.memory_space<vmem>>, vector<32x128xbf16>
      tpu.vector_store %arg6[%c0_14, %c0_15], %16 {strides = array<i32>} : memref<32x128xbf16, #tpu.memory_space<vmem>>, vector<32x128xbf16>,
      %cst_16 = arith.constant dense<0.000000e+00> : vector<128xf32>
      %18 = vector.multi_reduction <add>, %15, %cst_16 [0] : vector<32x128xf32> to vector<128xf32>
      %19 = vector.shape_cast %18 : vector<128xf32> to vector<1x128xf32>
      %20 = arith.mulf %15, %15 : vector<32x128xf32>
      %cst_17 = arith.constant dense<0.000000e+00> : vector<128xf32>
      %21 = vector.multi_reduction <add>, %20, %cst_17 [0] : vector<32x128xf32> to vector<128xf32>
      %22 = vector.shape_cast %21 : vector<128xf32> to vector<1x128xf32>
      %23 = vector.shape_cast %19 : vector<1x128xf32> to vector<1x128xf32>
      %24 = vector.broadcast %23 : vector<1x128xf32> to vector<8x128xf32>
      %c0_18 = arith.constant 0 : index
      %c0_19 = arith.constant 0 : index
      %25 = vector.load %arg7[%c0_18, %c0_19] : memref<8x128xf32, #tpu.memory_space<vmem>>, vector<8x128xf32>
      tpu.vector_store %arg7[%c0_18, %c0_19], %24 {strides = array<i32>} : memref<8x128xf32, #tpu.memory_space<vmem>>, vector<8x128xf32>,
      %26 = vector.shape_cast %22 : vector<1x128xf32> to vector<1x128xf32>
      %27 = vector.broadcast %26 : vector<1x128xf32> to vector<8x128xf32>
      %c0_20 = arith.constant 0 : index
      %c0_21 = arith.constant 0 : index
      %28 = vector.load %arg8[%c0_20, %c0_21] : memref<8x128xf32, #tpu.memory_space<vmem>>, vector<8x128xf32>
      tpu.vector_store %arg8[%c0_20, %c0_21], %27 {strides = array<i32>} : memref<8x128xf32, #tpu.memory_space<vmem>>, vector<8x128xf32>,
    } else {
    }
    return
  }
  func.func @transform_0(%arg0: i32, %arg1: i32, %arg2: i32) -> (i32, i32) {
    %c0_i32 = arith.constant 0 : i32
    return %arg0, %arg2 : i32, i32
  }
  func.func @transform_1(%arg0: i32, %arg1: i32, %arg2: i32) -> (i32, i32) {
    %c0_i32 = arith.constant 0 : i32
    return %arg2, %arg1 : i32, i32
  }
  func.func @transform_2(%arg0: i32, %arg1: i32, %arg2: i32) -> (i32, i32) {
    %c0_i32 = arith.constant 0 : i32
    %c0_i32_0 = arith.constant 0 : i32
    return %c0_i32, %arg1 : i32, i32
  }
  func.func @transform_3(%arg0: i32, %arg1: i32, %arg2: i32) -> (i32, i32) {
    %c0_i32 = arith.constant 0 : i32
    return %arg0, %arg1 : i32, i32
  }
  func.func @transform_4(%arg0: i32, %arg1: i32, %arg2: i32) -> (i32, i32) {
    %c0_i32 = arith.constant 0 : i32
    return %arg0, %arg1 : i32, i32
  }
  func.func @transform_5(%arg0: i32, %arg1: i32, %arg2: i32) -> (i32, i32) {
    %c0_i32 = arith.constant 0 : i32
    return %arg0, %arg1 : i32, i32
  }
}

</mosaic_0001>

<llo_original>
// kernel: dcgan_d_forward.5
$region0: #{dcgan_d_forward.5}
  #allocation0 [shape = 'u32[]', space=smem, size = 0x4, offset = 0x4, fixed_abs, tag = 'smem constant byte address 0x4 - core index']
  #allocation1 [shape = 'u32[144,128]{1,0:T(1,128)}', space=vmem, size = 0x12000, scoped, tag = 'internal scratch']
  #allocation2 [shape = 'f32[128,128]{1,0:T(8,128)}', space=vmem, size = 0x10000, scoped, tag = 'scratch operand']
  %s0 = inlined_call_operand.vmem [shape: bf16[128,64], index: 0, kind: input, shape index: {}]
  %s1 = inlined_call_operand.vmem [shape: bf16[64,128], index: 1, kind: input, shape index: {}]
  %s2 = inlined_call_operand.vmem [shape: f32[1,128], index: 2, kind: input, shape index: {}]
  %s3 = inlined_call_operand.vmem [shape: bf16[128,128], index: 3, kind: output, shape index: {}]
  %s4 = sld [smem:[#allocation0]]
  $region30: #{dcgan_d_forward.5} parent=0
    _
  %s6 = ssub.s32 1, %s4
  %s7 = scalar_select 0, %s6, %s4
  // Predicated region
  $region2: #{dcgan_d_forward.5} parent=0 // pred_check
    _
  $region3: #{dcgan_d_forward.5} parent=0 // pred_check_branch
    %9 = sbr.rel (0) target = $region5
  $region4: #{dcgan_d_forward.5} parent=0 // pred_region
    _
  $region5: #{dcgan_d_forward.5} parent=0 // pred_fallthru
    _
  // Predicated region
  $region6: #{dcgan_d_forward.5} parent=0 // pred_check
    _
  $region7: #{dcgan_d_forward.5} parent=0 // pred_check_branch
    %11 = sbr.rel (0) target = $region9
  $region8: #{dcgan_d_forward.5} parent=0 // pred_region
    _
  $region9: #{dcgan_d_forward.5} parent=0 // pred_fallthru
    _
  // Predicated region
  $region10: #{dcgan_d_forward.5} parent=0 // pred_check
    _
  $region11: #{dcgan_d_forward.5} parent=0 // pred_check_branch
    %13 = sbr.rel (0) target = $region13
  $region12: #{dcgan_d_forward.5} parent=0 // pred_region
    _
  $region13: #{dcgan_d_forward.5} parent=0 // pred_fallthru
    _
  %p15 = scmp.eq.s32.totalorder 0, 0
  // Predicated region
  $region14: #{dcgan_d_forward.5} parent=0 // pred_check
    %p16 = pneg %p15
  $region15: #{dcgan_d_forward.5} parent=0 // pred_check_branch
    %18 = sbr.rel (%p16) target = $region17
  $region16: #{dcgan_d_forward.5} parent=0 // pred_region
    %19 = vst [vmem:[#allocation2] sm:$0xff] 0.0
    %20 = vst [vmem:[#allocation2 + $0x8] sm:$0xff] 0.0
    %21 = vst [vmem:[#allocation2 + $0x10] sm:$0xff] 0.0
    %22 = vst [vmem:[#allocation2 + $0x18] sm:$0xff] 0.0
    %23 = vst [vmem:[#allocation2 + $0x20] sm:$0xff] 0.0
    %24 = vst [vmem:[#allocation2 + $0x28] sm:$0xff] 0.0
    %25 = vst [vmem:[#allocation2 + $0x30] sm:$0xff] 0.0
    %26 = vst [vmem:[#allocation2 + $0x38] sm:$0xff] 0.0
    %27 = vst [vmem:[#allocation2 + $0x40] sm:$0xff] 0.0
    %28 = vst [vmem:[#allocation2 + $0x48] sm:$0xff] 0.0
    %29 = vst [vmem:[#allocation2 + $0x50] sm:$0xff] 0.0
    %30 = vst [vmem:[#allocation2 + $0x58] sm:$0xff] 0.0
    %31 = vst [vmem:[#allocation2 + $0x60] sm:$0xff] 0.0
    %32 = vst [vmem:[#allocation2 + $0x68] sm:$0xff] 0.0
    %33 = vst [vmem:[#allocation2 + $0x70] sm:$0xff] 0.0
    %34 = vst [vmem:[#allocation2 + $0x78] sm:$0xff] 0.0
  $region17: #{dcgan_d_forward.5} parent=0 // pred_fallthru
    _
  %v35 = vld [vmem:[#allocation2] sm:$0xff]
  %v36 = vld [vmem:[#allocation2 + $0x8] sm:$0xff]
  %v37 = vld [vmem:[#allocation2 + $0x10] sm:$0xff]
  %v38 = vld [vmem:[#allocation2 + $0x18] sm:$0xff]
  %v39 = vld [vmem:[#allocation2 + $0x20] sm:$0xff]
  %v40 = vld [vmem:[#allocation2 + $0x28] sm:$0xff]
  %v41 = vld [vmem:[#allocation2 + $0x30] sm:$0xff]
  %v42 = vld [vmem:[#allocation2 + $0x38] sm:$0xff]
  %v43 = vld [vmem:[#allocation2 + $0x40] sm:$0xff]
  %v44 = vld [vmem:[#allocation2 + $0x48] sm:$0xff]
  %v45 = vld [vmem:[#allocation2 + $0x50] sm:$0xff]
  %v46 = vld [vmem:[#allocation2 + $0x58] sm:$0xff]
  %v47 = vld [vmem:[#allocation2 + $0x60] sm:$0xff]
  %v48 = vld [vmem:[#allocation2 + $0x68] sm:$0xff]
  %v49 = vld [vmem:[#allocation2 + $0x70] sm:$0xff]
  %v50 = vld [vmem:[#allocation2 + $0x78] sm:$0xff]
  %v51 = vld [vmem:[%s0] sm:$0xf]
  %v52 = vld [vmem:[%s0 + $0x4] sm:$0xf]
  %v53 = vld [vmem:[%s0 + $0x8] sm:$0xf]
  %v54 = vld [vmem:[%s0 + $0xc] sm:$0xf]
  %v55 = vld [vmem:[%s0 + $0x10] sm:$0xf]
  %v56 = vld [vmem:[%s0 + $0x14] sm:$0xf]
  %v57 = vld [vmem:[%s0 + $0x18] sm:$0xf]
  %v58 = vld [vmem:[%s0 + $0x1c] sm:$0xf]
  %v59 = vld [vmem:[%s0 + $0x20] sm:$0xf]
  %v60 = vld [vmem:[%s0 + $0x24] sm:$0xf]
  %v61 = vld [vmem:[%s0 + $0x28] sm:$0xf]
  %v62 = vld [vmem:[%s0 + $0x2c] sm:$0xf]
  %v63 = vld [vmem:[%s0 + $0x30] sm:$0xf]
  %v64 = vld [vmem:[%s0 + $0x34] sm:$0xf]
  %v65 = vld [vmem:[%s0 + $0x38] sm:$0xf]
  %v66 = vld [vmem:[%s0 + $0x3c] sm:$0xf]
  %v67 = vld [vmem:[%s1] sm:$0xf]
  %v68 = vld [vmem:[%s1 + $0x4] sm:$0xf]
  %v69 = vld [vmem:[%s1 + $0x8] sm:$0xf]
  %v70 = vld [vmem:[%s1 + $0xc] sm:$0xf]
  %v71 = vld [vmem:[%s1 + $0x10] sm:$0xf]
  %v72 = vld [vmem:[%s1 + $0x14] sm:$0xf]
  %v73 = vld [vmem:[%s1 + $0x18] sm:$0xf]
  %v74 = vld [vmem:[%s1 + $0x1c] sm:$0xf]
  %v91 = vunpack.c.l.b16 %v51
  %v92 = vunpack.c.l.b16 %v52
  %v93 = vunpack.c.l.b16 %v53
  %v94 = vunpack.c.l.b16 %v54
  %v95 = vunpack.c.l.b16 %v55
  %v96 = vunpack.c.l.b16 %v56
  %v97 = vunpack.c.l.b16 %v57
  %v98 = vunpack.c.l.b16 %v58
  %v99 = vunpack.c.l.b16 %v59
  %v100 = vunpack.c.l.b16 %v60
  %v101 = vunpack.c.l.b16 %v61
  %v102 = vunpack.c.l.b16 %v62
  %v103 = vunpack.c.l.b16 %v63
  %v104 = vunpack.c.l.b16 %v64
  %v105 = vunpack.c.l.b16 %v65
  %v106 = vunpack.c.l.b16 %v66
  %v107 = vpack.c.b16 %v92, %v91
  %v108 = vpack.c.b16 %v94, %v93
  %v109 = vpack.c.b16 %v96, %v95
  %v110 = vpack.c.b16 %v98, %v97
  %v111 = vpack.c.b16 %v100, %v99
  %v112 = vpack.c.b16 %v102, %v101
  %v113 = vpack.c.b16 %v104, %v103
  %v114 = vpack.c.b16 %v106, %v105
  %v123 = vunpack.c.l.b16 %v67
  %v124 = vunpack.c.l.b16 %v68
  %v125 = vunpack.c.l.b16 %v69
  %v126 = vunpack.c.l.b16 %v70
  %v127 = vunpack.c.l.b16 %v71
  %v128 = vunpack.c.l.b16 %v72
  %v129 = vunpack.c.l.b16 %v73
  %v130 = vunpack.c.l.b16 %v74
  %v131 = vpack.c.b16 %v124, %v123
  %v132 = vpack.c.b16 %v126, %v125
  %v133 = vpack.c.b16 %v128, %v127
  %v134 = vpack.c.b16 %v130, %v129
  %vm139 = vcmask 523264
  %v141 = vsel %vm139, %v107, 0
  %v144 = vsel %vm139, %v108, 0
  %v147 = vsel %vm139, %v109, 0
  %v150 = vsel %vm139, %v110, 0
  %v153 = vsel %vm139, %v111, 0
  %v156 = vsel %vm139, %v112, 0
  %v159 = vsel %vm139, %v113, 0
  %v162 = vsel %vm139, %v114, 0
  %164 = vmatprep.subr.bf16.mxu0 0
  %165 = vmatpush1.bf16.msra.mxu0 %v131
  %166 = vmatprep.subr.bf16.mxu0 0
  %167 = vmatpush1.bf16.msra.mxu0 %v132
  %168 = vmatprep.subr.bf16.mxu0 0
  %169 = vmatpush1.bf16.msra.mxu0 %v133
  %170 = vmatprep.subr.bf16.mxu0 0
  %171 = vmatpush1.bf16.msra.mxu0 %v134
  %172 = vmatprep.subr.bf16.mxu0 0
  %173 = vmatpush1.bf16.msra.mxu0 0
  %174 = vmatprep.subr.bf16.mxu0 0
  %175 = vmatpush1.bf16.msra.mxu0 0
  %176 = vmatprep.subr.bf16.mxu0 0
  %177 = vmatpush1.bf16.msra.mxu0 0
  %178 = vmatprep.subr.bf16.mxu0 0
  %179 = vmatpush1.bf16.msra.mxu0 0
  %180 = vmatprep.subr.bf16.mxu0 0
  %181 = vmatpush1.bf16.msra.mxu0 0
  %182 = vmatprep.subr.bf16.mxu0 0
  %183 = vmatpush1.bf16.msra.mxu0 0
  %184 = vmatprep.subr.bf16.mxu0 0
  %185 = vmatpush1.bf16.msra.mxu0 0
  %186 = vmatprep.subr.bf16.mxu0 0
  %187 = vmatpush1.bf16.msra.mxu0 0
  %188 = vmatprep.subr.bf16.mxu0 0
  %189 = vmatpush1.bf16.msra.mxu0 0
  %190 = vmatprep.subr.bf16.mxu0 0
  %191 = vmatpush1.bf16.msra.mxu0 0
  %192 = vmatprep.subr.bf16.mxu0 0
  %193 = vmatpush1.bf16.msra.mxu0 0
  %194 = vmatprep.subr.bf16.mxu0 0
  %195 = vmatpush1.bf16.msra.mxu0 0
  %196 = vmatprep.mubr.bf16.mxu0 0
  %197 = vmatmul.mubr.bf16.gmra.mrb[0].mxu0 %v141
  %v198 = vpop.f32.mrb[0].mxu0
  %v199 = vadd.f32 0.0, %v198
  %v200 = vpop.f32.mrb[0].mxu0
  %v201 = vpop.f32.mrb[0].mxu0
  %v202 = vadd.f32 0.0, %v201
  %v203 = vpop.f32.mrb[0].mxu0
  %204 = vmatprep.mubr.bf16.mxu0 0
  %205 = vmatmul.mubr.bf16.gmra.mrb[0].mxu0 %v144
  %v206 = vpop.f32.mrb[0].mxu0
  %v207 = vadd.f32 0.0, %v206
  %v208 = vpop.f32.mrb[0].mxu0
  %v209 = vpop.f32.mrb[0].mxu0
  %v210 = vadd.f32 0.0, %v209
  %v211 = vpop.f32.mrb[0].mxu0
  %212 = vmatprep.mubr.bf16.mxu0 0
  %213 = vmatmul.mubr.bf16.gmra.mrb[0].mxu0 %v147
  %v214 = vpop.f32.mrb[0].mxu0
  %v215 = vadd.f32 0.0, %v214
  %v216 = vpop.f32.mrb[0].mxu0
  %v217 = vpop.f32.mrb[0].mxu0
  %v218 = vadd.f32 0.0, %v217
  %v219 = vpop.f32.mrb[0].mxu0
  %220 = vmatprep.mubr.bf16.mxu0 0
  %221 = vmatmul.mubr.bf16.gmra.mrb[0].mxu0 %v150
  %v222 = vpop.f32.mrb[0].mxu0
  %v223 = vadd.f32 0.0, %v222
  %v224 = vpop.f32.mrb[0].mxu0
  %v225 = vpop.f32.mrb[0].mxu0
  %v226 = vadd.f32 0.0, %v225
  %v227 = vpop.f32.mrb[0].mxu0
  %228 = vmatprep.mubr.bf16.mxu0 0
  %229 = vmatmul.mubr.bf16.gmra.mrb[0].mxu0 %v153
  %v230 = vpop.f32.mrb[0].mxu0
  %v231 = vadd.f32 0.0, %v230
  %v232 = vpop.f32.mrb[0].mxu0
  %v233 = vpop.f32.mrb[0].mxu0
  %v234 = vadd.f32 0.0, %v233
  %v235 = vpop.f32.mrb[0].mxu0
  %236 = vmatprep.mubr.bf16.mxu0 0
  %237 = vmatmul.mubr.bf16.gmra.mrb[0].mxu0 %v156
  %v238 = vpop.f32.mrb[0].mxu0
  %v239 = vadd.f32 0.0, %v238
  %v240 = vpop.f32.mrb[0].mxu0
  %v241 = vpop.f32.mrb[0].mxu0
  %v242 = vadd.f32 0.0, %v241
  %v243 = vpop.f32.mrb[0].mxu0
  %244 = vmatprep.mubr.bf16.mxu0 0
  %245 = vmatmul.mubr.bf16.gmra.mrb[0].mxu0 %v159
  %v246 = vpop.f32.mrb[0].mxu0
  %v247 = vadd.f32 0.0, %v246
  %v248 = vpop.f32.mrb[0].mxu0
  %v249 = vpop.f32.mrb[0].mxu0
  %v250 = vadd.f32 0.0, %v249
  %v251 = vpop.f32.mrb[0].mxu0
  %252 = vmatprep.mubr.bf16.mxu0 0
  %253 = vmatmul.mubr.bf16.gmra.mrb[0].mxu0 %v162
  %v254 = vpop.f32.mrb[0].mxu0
  %v255 = vadd.f32 0.0, %v254
  %v256 = vpop.f32.mrb[0].mxu0
  %v257 = vpop.f32.mrb[0].mxu0
  %v258 = vadd.f32 0.0, %v257
  %v259 = vpop.f32.mrb[0].mxu0
  %260 = vdwg.mxu0
  %v261 = vadd.f32 %v35, %v199
  %v262 = vadd.f32 %v36, %v202
  %v263 = vadd.f32 %v37, %v207
  %v264 = vadd.f32 %v38, %v210
  %v265 = vadd.f32 %v39, %v215
  %v266 = vadd.f32 %v40, %v218
  %v267 = vadd.f32 %v41, %v223
  %v268 = vadd.f32 %v42, %v226
  %v269 = vadd.f32 %v43, %v231
  %v270 = vadd.f32 %v44, %v234
  %v271 = vadd.f32 %v45, %v239
  %v272 = vadd.f32 %v46, %v242
  %v273 = vadd.f32 %v47, %v247
  %v274 = vadd.f32 %v48, %v250
  %v275 = vadd.f32 %v49, %v255
  %v276 = vadd.f32 %v50, %v258
  %277 = vst [vmem:[#allocation2] sm:$0xff] %v261
  %278 = vst [vmem:[#allocation2 + $0x8] sm:$0xff] %v262
  %279 = vst [vmem:[#allocation2 + $0x10] sm:$0xff] %v263
  %280 = vst [vmem:[#allocation2 + $0x18] sm:$0xff] %v264
  %281 = vst [vmem:[#allocation2 + $0x20] sm:$0xff] %v265
  %282 = vst [vmem:[#allocation2 + $0x28] sm:$0xff] %v266
  %283 = vst [vmem:[#allocation2 + $0x30] sm:$0xff] %v267
  %284 = vst [vmem:[#allocation2 + $0x38] sm:$0xff] %v268
  %285 = vst [vmem:[#allocation2 + $0x40] sm:$0xff] %v269
  %286 = vst [vmem:[#allocation2 + $0x48] sm:$0xff] %v270
  %287 = vst [vmem:[#allocation2 + $0x50] sm:$0xff] %v271
  %288 = vst [vmem:[#allocation2 + $0x58] sm:$0xff] %v272
  %289 = vst [vmem:[#allocation2 + $0x60] sm:$0xff] %v273
  %290 = vst [vmem:[#allocation2 + $0x68] sm:$0xff] %v274
  %291 = vst [vmem:[#allocation2 + $0x70] sm:$0xff] %v275
  %292 = vst [vmem:[#allocation2 + $0x78] sm:$0xff] %v276
  // Predicated region
  $region18: #{dcgan_d_forward.5} parent=0 // pred_check
    %p293 = pneg %p15
  $region19: #{dcgan_d_forward.5} parent=0 // pred_check_branch
    %295 = sbr.rel (%p293) target = $region21
  $region20: #{dcgan_d_forward.5} parent=0 // pred_region
    %v296 = vld [vmem:[#allocation2] sm:$0xff]
    %v297 = vld [vmem:[#allocation2 + $0x8] sm:$0xff]
    %v298 = vld [vmem:[#allocation2 + $0x10] sm:$0xff]
    %v299 = vld [vmem:[#allocation2 + $0x18] sm:$0xff]
    %v300 = vld [vmem:[#allocation2 + $0x20] sm:$0xff]
    %v301 = vld [vmem:[#allocation2 + $0x28] sm:$0xff]
    %v302 = vld [vmem:[#allocation2 + $0x30] sm:$0xff]
    %v303 = vld [vmem:[#allocation2 + $0x38] sm:$0xff]
    %v304 = vld [vmem:[#allocation2 + $0x40] sm:$0xff]
    %v305 = vld [vmem:[#allocation2 + $0x48] sm:$0xff]
    %v306 = vld [vmem:[#allocation2 + $0x50] sm:$0xff]
    %v307 = vld [vmem:[#allocation2 + $0x58] sm:$0xff]
    %v308 = vld [vmem:[#allocation2 + $0x60] sm:$0xff]
    %v309 = vld [vmem:[#allocation2 + $0x68] sm:$0xff]
    %v310 = vld [vmem:[#allocation2 + $0x70] sm:$0xff]
    %v311 = vld [vmem:[#allocation2 + $0x78] sm:$0xff]
    %v312 = vld [vmem:[%s2] sm:$0x1]
    %v314 = vlaneseq
    %v315 = vshrl.u32 %v314, 7
    %v316 = vsub.s32 0, %v315
    %v317 = vrot.slane %v312, %v316
    %v319 = vadd.f32 %v296, %v317
    %v320 = vadd.f32 %v297, %v317
    %v321 = vadd.f32 %v298, %v317
    %v322 = vadd.f32 %v299, %v317
    %v323 = vadd.f32 %v300, %v317
    %v324 = vadd.f32 %v301, %v317
    %v325 = vadd.f32 %v302, %v317
    %v326 = vadd.f32 %v303, %v317
    %v327 = vadd.f32 %v304, %v317
    %v328 = vadd.f32 %v305, %v317
    %v329 = vadd.f32 %v306, %v317
    %v330 = vadd.f32 %v307, %v317
    %v331 = vadd.f32 %v308, %v317
    %v332 = vadd.f32 %v309, %v317
    %v333 = vadd.f32 %v310, %v317
    %v334 = vadd.f32 %v311, %v317
    %vm335 = vcmp.ge.f32.partialorder %v319, 0.0
    %vm336 = vcmp.ge.f32.partialorder %v320, 0.0
    %vm337 = vcmp.ge.f32.partialorder %v321, 0.0
    %vm338 = vcmp.ge.f32.partialorder %v322, 0.0
    %vm339 = vcmp.ge.f32.partialorder %v323, 0.0
    %vm340 = vcmp.ge.f32.partialorder %v324, 0.0
    %vm341 = vcmp.ge.f32.partialorder %v325, 0.0
    %vm342 = vcmp.ge.f32.partialorder %v326, 0.0
    %vm343 = vcmp.ge.f32.partialorder %v327, 0.0
    %vm344 = vcmp.ge.f32.partialorder %v328, 0.0
    %vm345 = vcmp.ge.f32.partialorder %v329, 0.0
    %vm346 = vcmp.ge.f32.partialorder %v330, 0.0
    %vm347 = vcmp.ge.f32.partialorder %v331, 0.0
    %vm348 = vcmp.ge.f32.partialorder %v332, 0.0
    %vm349 = vcmp.ge.f32.partialorder %v333, 0.0
    %vm350 = vcmp.ge.f32.partialorder %v334, 0.0
    %v351 = vmul.f32 %v319, 0.2
    %v352 = vmul.f32 %v320, 0.2
    %v353 = vmul.f32 %v321, 0.2
    %v354 = vmul.f32 %v322, 0.2
    %v355 = vmul.f32 %v323, 0.2
    %v356 = vmul.f32 %v324, 0.2
    %v357 = vmul.f32 %v325, 0.2
    %v358 = vmul.f32 %v326, 0.2
    %v359 = vmul.f32 %v327, 0.2
    %v360 = vmul.f32 %v328, 0.2
    %v361 = vmul.f32 %v329, 0.2
    %v362 = vmul.f32 %v330, 0.2
    %v363 = vmul.f32 %v331, 0.2
    %v364 = vmul.f32 %v332, 0.2
    %v365 = vmul.f32 %v333, 0.2
    %v366 = vmul.f32 %v334, 0.2
    %v367 = vsel %vm335, %v319, %v351
    %v368 = vsel %vm336, %v320, %v352
    %v369 = vsel %vm337, %v321, %v353
    %v370 = vsel %vm338, %v322, %v354
    %v371 = vsel %vm339, %v323, %v355
    %v372 = vsel %vm340, %v324, %v356
    %v373 = vsel %vm341, %v325, %v357
    %v374 = vsel %vm342, %v326, %v358
    %v375 = vsel %vm343, %v327, %v359
    %v376 = vsel %vm344, %v328, %v360
    %v377 = vsel %vm345, %v329, %v361
    %v378 = vsel %vm346, %v330, %v362
    %v379 = vsel %vm347, %v331, %v363
    %v380 = vsel %vm348, %v332, %v364
    %v381 = vsel %vm349, %v333, %v365
    %v382 = vsel %vm350, %v334, %v366
    %v383 = vpack.c.bf16 %v368, %v367
    %v384 = vpack.c.bf16 %v370, %v369
    %v385 = vpack.c.bf16 %v372, %v371
    %v386 = vpack.c.bf16 %v374, %v373
    %v387 = vpack.c.bf16 %v376, %v375
    %v388 = vpack.c.bf16 %v378, %v377
    %v389 = vpack.c.bf16 %v380, %v379
    %v390 = vpack.c.bf16 %v382, %v381
    %v399 = vunpack.c.l.b16 %v383
    %v400 = vunpack.c.h.b16 %v383
    %v401 = vunpack.c.l.b16 %v384
    %v402 = vunpack.c.h.b16 %v384
    %v403 = vunpack.c.l.b16 %v385
    %v404 = vunpack.c.h.b16 %v385
    %v405 = vunpack.c.l.b16 %v386
    %v406 = vunpack.c.h.b16 %v386
    %v407 = vunpack.c.l.b16 %v387
    %v408 = vunpack.c.h.b16 %v387
    %v409 = vunpack.c.l.b16 %v388
    %v410 = vunpack.c.h.b16 %v388
    %v411 = vunpack.c.l.b16 %v389
    %v412 = vunpack.c.h.b16 %v389
    %v413 = vunpack.c.l.b16 %v390
    %v414 = vunpack.c.h.b16 %v390
    %v415 = vpack.c.b16 %v399, %v399
    %v416 = vpack.c.b16 %v400, %v400
    %v417 = vpack.c.b16 %v401, %v401
    %v418 = vpack.c.b16 %v402, %v402
    %v419 = vpack.c.b16 %v403, %v403
    %v420 = vpack.c.b16 %v404, %v404
    %v421 = vpack.c.b16 %v405, %v405
    %v422 = vpack.c.b16 %v406, %v406
    %v423 = vpack.c.b16 %v407, %v407
    %v424 = vpack.c.b16 %v408, %v408
    %v425 = vpack.c.b16 %v409, %v409
    %v426 = vpack.c.b16 %v410, %v410
    %v427 = vpack.c.b16 %v411, %v411
    %v428 = vpack.c.b16 %v412, %v412
    %v429 = vpack.c.b16 %v413, %v413
    %v430 = vpack.c.b16 %v414, %v414
    %447 = vst [vmem:[%s3] sm:$0xf] %v415
    %448 = vst [vmem:[%s3 + $0x4] sm:$0xf] %v416
    %449 = vst [vmem:[%s3 + $0x8] sm:$0xf] %v417
    %450 = vst [vmem:[%s3 + $0xc] sm:$0xf] %v418
    %451 = vst [vmem:[%s3 + $0x10] sm:$0xf] %v419
    %452 = vst [vmem:[%s3 + $0x14] sm:$0xf] %v420
    %453 = vst [vmem:[%s3 + $0x18] sm:$0xf] %v421
    %454 = vst [vmem:[%s3 + $0x1c] sm:$0xf] %v422
    %455 = vst [vmem:[%s3 + $0x20] sm:$0xf] %v423
    %456 = vst [vmem:[%s3 + $0x24] sm:$0xf] %v424
    %457 = vst [vmem:[%s3 + $0x28] sm:$0xf] %v425
    %458 = vst [vmem:[%s3 + $0x2c] sm:$0xf] %v426
    %459 = vst [vmem:[%s3 + $0x30] sm:$0xf] %v427
    %460 = vst [vmem:[%s3 + $0x34] sm:$0xf] %v428
    %461 = vst [vmem:[%s3 + $0x38] sm:$0xf] %v429
    %462 = vst [vmem:[%s3 + $0x3c] sm:$0xf] %v430
  $region21: #{dcgan_d_forward.5} parent=0 // pred_fallthru
    _
  // Predicated region
  $region22: #{dcgan_d_forward.5} parent=0 // pred_check
    _
  $region23: #{dcgan_d_forward.5} parent=0 // pred_check_branch
    %464 = sbr.rel (0) target = $region25
  $region24: #{dcgan_d_forward.5} parent=0 // pred_region
    _
  $region25: #{dcgan_d_forward.5} parent=0 // pred_fallthru
    _
  // Predicated region
  $region26: #{dcgan_d_forward.5} parent=0 // pred_check
    _
  $region27: #{dcgan_d_forward.5} parent=0 // pred_check_branch
    %466 = sbr.rel (0) target = $region29
  $region28: #{dcgan_d_forward.5} parent=0 // pred_region
    _
  $region29: #{dcgan_d_forward.5} parent=0 // pred_fallthru
    _

// kernel: dcgan_d_forward.7
$region0: #{dcgan_d_forward.7}
  #allocation0 [shape = 'u32[]', space=smem, size = 0x4, offset = 0x4, fixed_abs, tag = 'smem constant byte address 0x4 - core index']
  #allocation1 [shape = 'u32[144,128]{1,0:T(1,128)}', space=vmem, size = 0x12000, scoped, tag = 'internal scratch']
  %s0 = inlined_call_operand.vmem [shape: bf16[128,128], index: 0, kind: input, shape index: {}]
  %s1 = inlined_call_operand.vmem [shape: f32[1,128], index: 1, kind: input, shape index: {}]
  %s2 = inlined_call_operand.vmem [shape: f32[1,128], index: 2, kind: input, shape index: {}]
  %s3 = inlined_call_operand.vmem [shape: bf16[128,128], index: 3, kind: output, shape index: {}]
  %s4 = sld [smem:[#allocation0]]
  $region22: #{dcgan_d_forward.7} parent=0
    _
  %s6 = ssub.s32 1, %s4
  %s7 = scalar_select 0, %s6, %s4
  // Predicated region
  $region2: #{dcgan_d_forward.7} parent=0 // pred_check
    _
  $region3: #{dcgan_d_forward.7} parent=0 // pred_check_branch
    %9 = sbr.rel (0) target = $region5
  $region4: #{dcgan_d_forward.7} parent=0 // pred_region
    _
  $region5: #{dcgan_d_forward.7} parent=0 // pred_fallthru
    _
  // Predicated region
  $region6: #{dcgan_d_forward.7} parent=0 // pred_check
    _
  $region7: #{dcgan_d_forward.7} parent=0 // pred_check_branch
    %11 = sbr.rel (0) target = $region9
  $region8: #{dcgan_d_forward.7} parent=0 // pred_region
    _
  $region9: #{dcgan_d_forward.7} parent=0 // pred_fallthru
    _
  // Predicated region
  $region10: #{dcgan_d_forward.7} parent=0 // pred_check
    _
  $region11: #{dcgan_d_forward.7} parent=0 // pred_check_branch
    %13 = sbr.rel (0) target = $region13
  $region12: #{dcgan_d_forward.7} parent=0 // pred_region
    _
  $region13: #{dcgan_d_forward.7} parent=0 // pred_fallthru
    _
  %v14 = vld [vmem:[%s0] sm:$0xf]
  %v15 = vld [vmem:[%s0 + $0x4] sm:$0xf]
  %v16 = vld [vmem:[%s0 + $0x8] sm:$0xf]
  %v17 = vld [vmem:[%s0 + $0xc] sm:$0xf]
  %v18 = vld [vmem:[%s0 + $0x10] sm:$0xf]
  %v19 = vld [vmem:[%s0 + $0x14] sm:$0xf]
  %v20 = vld [vmem:[%s0 + $0x18] sm:$0xf]
  %v21 = vld [vmem:[%s0 + $0x1c] sm:$0xf]
  %v22 = vld [vmem:[%s0 + $0x20] sm:$0xf]
  %v23 = vld [vmem:[%s0 + $0x24] sm:$0xf]
  %v24 = vld [vmem:[%s0 + $0x28] sm:$0xf]
  %v25 = vld [vmem:[%s0 + $0x2c] sm:$0xf]
  %v26 = vld [vmem:[%s0 + $0x30] sm:$0xf]
  %v27 = vld [vmem:[%s0 + $0x34] sm:$0xf]
  %v28 = vld [vmem:[%s0 + $0x38] sm:$0xf]
  %v29 = vld [vmem:[%s0 + $0x3c] sm:$0xf]
  %v30 = vunpack.c.l.bf16 %v14
  %v31 = vunpack.c.l.bf16 %v15
  %v32 = vunpack.c.l.bf16 %v16
  %v33 = vunpack.c.l.bf16 %v17
  %v34 = vunpack.c.l.bf16 %v18
  %v35 = vunpack.c.l.bf16 %v19
  %v36 = vunpack.c.l.bf16 %v20
  %v37 = vunpack.c.l.bf16 %v21
  %v38 = vunpack.c.l.bf16 %v22
  %v39 = vunpack.c.l.bf16 %v23
  %v40 = vunpack.c.l.bf16 %v24
  %v41 = vunpack.c.l.bf16 %v25
  %v42 = vunpack.c.l.bf16 %v26
  %v43 = vunpack.c.l.bf16 %v27
  %v44 = vunpack.c.l.bf16 %v28
  %v45 = vunpack.c.l.bf16 %v29
  %v46 = vld [vmem:[%s1] sm:$0x1]
  %v48 = vlaneseq
  %v49 = vshrl.u32 %v48, 7
  %v50 = vsub.s32 0, %v49
  %v51 = vrot.slane %v46, %v50
  %v53 = vmul.f32 %v30, %v51
  %v54 = vmul.f32 %v31, %v51
  %v55 = vmul.f32 %v32, %v51
  %v56 = vmul.f32 %v33, %v51
  %v57 = vmul.f32 %v34, %v51
  %v58 = vmul.f32 %v35, %v51
  %v59 = vmul.f32 %v36, %v51
  %v60 = vmul.f32 %v37, %v51
  %v61 = vmul.f32 %v38, %v51
  %v62 = vmul.f32 %v39, %v51
  %v63 = vmul.f32 %v40, %v51
  %v64 = vmul.f32 %v41, %v51
  %v65 = vmul.f32 %v42, %v51
  %v66 = vmul.f32 %v43, %v51
  %v67 = vmul.f32 %v44, %v51
  %v68 = vmul.f32 %v45, %v51
  %v69 = vld [vmem:[%s2] sm:$0x1]
  %v71 = vlaneseq
  %v72 = vshrl.u32 %v71, 7
  %v73 = vsub.s32 0, %v72
  %v74 = vrot.slane %v69, %v73
  %v76 = vadd.f32 %v53, %v74
  %v77 = vadd.f32 %v54, %v74
  %v78 = vadd.f32 %v55, %v74
  %v79 = vadd.f32 %v56, %v74
  %v80 = vadd.f32 %v57, %v74
  %v81 = vadd.f32 %v58, %v74
  %v82 = vadd.f32 %v59, %v74
  %v83 = vadd.f32 %v60, %v74
  %v84 = vadd.f32 %v61, %v74
  %v85 = vadd.f32 %v62, %v74
  %v86 = vadd.f32 %v63, %v74
  %v87 = vadd.f32 %v64, %v74
  %v88 = vadd.f32 %v65, %v74
  %v89 = vadd.f32 %v66, %v74
  %v90 = vadd.f32 %v67, %v74
  %v91 = vadd.f32 %v68, %v74
  %vm92 = vcmp.ge.f32.partialorder %v76, 0.0
  %vm93 = vcmp.ge.f32.partialorder %v77, 0.0
  %vm94 = vcmp.ge.f32.partialorder %v78, 0.0
  %vm95 = vcmp.ge.f32.partialorder %v79, 0.0
  %vm96 = vcmp.ge.f32.partialorder %v80, 0.0
  %vm97 = vcmp.ge.f32.partialorder %v81, 0.0
  %vm98 = vcmp.ge.f32.partialorder %v82, 0.0
  %vm99 = vcmp.ge.f32.partialorder %v83, 0.0
  %vm100 = vcmp.ge.f32.partialorder %v84, 0.0
  %vm101 = vcmp.ge.f32.partialorder %v85, 0.0
  %vm102 = vcmp.ge.f32.partialorder %v86, 0.0
  %vm103 = vcmp.ge.f32.partialorder %v87, 0.0
  %vm104 = vcmp.ge.f32.partialorder %v88, 0.0
  %vm105 = vcmp.ge.f32.partialorder %v89, 0.0
  %vm106 = vcmp.ge.f32.partialorder %v90, 0.0
  %vm107 = vcmp.ge.f32.partialorder %v91, 0.0
  %v108 = vmul.f32 %v76, 0.2
  %v109 = vmul.f32 %v77, 0.2
  %v110 = vmul.f32 %v78, 0.2
  %v111 = vmul.f32 %v79, 0.2
  %v112 = vmul.f32 %v80, 0.2
  %v113 = vmul.f32 %v81, 0.2
  %v114 = vmul.f32 %v82, 0.2
  %v115 = vmul.f32 %v83, 0.2
  %v116 = vmul.f32 %v84, 0.2
  %v117 = vmul.f32 %v85, 0.2
  %v118 = vmul.f32 %v86, 0.2
  %v119 = vmul.f32 %v87, 0.2
  %v120 = vmul.f32 %v88, 0.2
  %v121 = vmul.f32 %v89, 0.2
  %v122 = vmul.f32 %v90, 0.2
  %v123 = vmul.f32 %v91, 0.2
  %v124 = vsel %vm92, %v76, %v108
  %v125 = vsel %vm93, %v77, %v109
  %v126 = vsel %vm94, %v78, %v110
  %v127 = vsel %vm95, %v79, %v111
  %v128 = vsel %vm96, %v80, %v112
  %v129 = vsel %vm97, %v81, %v113
  %v130 = vsel %vm98, %v82, %v114
  %v131 = vsel %vm99, %v83, %v115
  %v132 = vsel %vm100, %v84, %v116
  %v133 = vsel %vm101, %v85, %v117
  %v134 = vsel %vm102, %v86, %v118
  %v135 = vsel %vm103, %v87, %v119
  %v136 = vsel %vm104, %v88, %v120
  %v137 = vsel %vm105, %v89, %v121
  %v138 = vsel %vm106, %v90, %v122
  %v139 = vsel %vm107, %v91, %v123
  %v140 = vpack.c.bf16 %v125, %v124
  %v141 = vpack.c.bf16 %v127, %v126
  %v142 = vpack.c.bf16 %v129, %v128
  %v143 = vpack.c.bf16 %v131, %v130
  %v144 = vpack.c.bf16 %v133, %v132
  %v145 = vpack.c.bf16 %v135, %v134
  %v146 = vpack.c.bf16 %v137, %v136
  %v147 = vpack.c.bf16 %v139, %v138
  %v156 = vunpack.c.l.b16 %v140
  %v157 = vunpack.c.h.b16 %v140
  %v158 = vunpack.c.l.b16 %v141
  %v159 = vunpack.c.h.b16 %v141
  %v160 = vunpack.c.l.b16 %v142
  %v161 = vunpack.c.h.b16 %v142
  %v162 = vunpack.c.l.b16 %v143
  %v163 = vunpack.c.h.b16 %v143
  %v164 = vunpack.c.l.b16 %v144
  %v165 = vunpack.c.h.b16 %v144
  %v166 = vunpack.c.l.b16 %v145
  %v167 = vunpack.c.h.b16 %v145
  %v168 = vunpack.c.l.b16 %v146
  %v169 = vunpack.c.h.b16 %v146
  %v170 = vunpack.c.l.b16 %v147
  %v171 = vunpack.c.h.b16 %v147
  %v172 = vpack.c.b16 %v156, %v156
  %v173 = vpack.c.b16 %v157, %v157
  %v174 = vpack.c.b16 %v158, %v158
  %v175 = vpack.c.b16 %v159, %v159
  %v176 = vpack.c.b16 %v160, %v160
  %v177 = vpack.c.b16 %v161, %v161
  %v178 = vpack.c.b16 %v162, %v162
  %v179 = vpack.c.b16 %v163, %v163
  %v180 = vpack.c.b16 %v164, %v164
  %v181 = vpack.c.b16 %v165, %v165
  %v182 = vpack.c.b16 %v166, %v166
  %v183 = vpack.c.b16 %v167, %v167
  %v184 = vpack.c.b16 %v168, %v168
  %v185 = vpack.c.b16 %v169, %v169
  %v186 = vpack.c.b16 %v170, %v170
  %v187 = vpack.c.b16 %v171, %v171
  %204 = vst [vmem:[%s3] sm:$0xf] %v172
  %205 = vst [vmem:[%s3 + $0x4] sm:$0xf] %v173
  %206 = vst [vmem:[%s3 + $0x8] sm:$0xf] %v174
  %207 = vst [vmem:[%s3 + $0xc] sm:$0xf] %v175
  %208 = vst [vmem:[%s3 + $0x10] sm:$0xf] %v176
  %209 = vst [vmem:[%s3 + $0x14] sm:$0xf] %v177
  %210 = vst [vmem:[%s3 + $0x18] sm:$0xf] %v178
  %211 = vst [vmem:[%s3 + $0x1c] sm:$0xf] %v179
  %212 = vst [vmem:[%s3 + $0x20] sm:$0xf] %v180
  %213 = vst [vmem:[%s3 + $0x24] sm:$0xf] %v181
  %214 = vst [vmem:[%s3 + $0x28] sm:$0xf] %v182
  %215 = vst [vmem:[%s3 + $0x2c] sm:$0xf] %v183
  %216 = vst [vmem:[%s3 + $0x30] sm:$0xf] %v184
  %217 = vst [vmem:[%s3 + $0x34] sm:$0xf] %v185
  %218 = vst [vmem:[%s3 + $0x38] sm:$0xf] %v186
  %219 = vst [vmem:[%s3 + $0x3c] sm:$0xf] %v187
  // Predicated region
  $region14: #{dcgan_d_forward.7} parent=0 // pred_check
    _
  $region15: #{dcgan_d_forward.7} parent=0 // pred_check_branch
    %221 = sbr.rel (0) target = $region17
  $region16: #{dcgan_d_forward.7} parent=0 // pred_region
    _
  $region17: #{dcgan_d_forward.7} parent=0 // pred_fallthru
    _
  // Predicated region
  $region18: #{dcgan_d_forward.7} parent=0 // pred_check
    _
  $region19: #{dcgan_d_forward.7} parent=0 // pred_check_branch
    %223 = sbr.rel (0) target = $region21
  $region20: #{dcgan_d_forward.7} parent=0 // pred_region
    _
  $region21: #{dcgan_d_forward.7} parent=0 // pred_fallthru
    _

// kernel: dcgan_d_forward.6
$region0: #{dcgan_d_forward.6}
  #allocation0 [shape = 'u32[]', space=smem, size = 0x4, offset = 0x4, fixed_abs, tag = 'smem constant byte address 0x4 - core index']
  #allocation1 [shape = 'u32[144,128]{1,0:T(1,128)}', space=vmem, size = 0x12000, scoped, tag = 'internal scratch']
  #allocation2 [shape = 'f32[128,128]{1,0:T(8,128)}', space=vmem, size = 0x10000, scoped, tag = 'scratch operand']
  %s0 = inlined_call_operand.vmem [shape: bf16[128,72], index: 0, kind: input, shape index: {}]
  %s1 = inlined_call_operand.vmem [shape: bf16[72,128], index: 1, kind: input, shape index: {}]
  %s2 = inlined_call_operand.vmem [shape: f32[1,128], index: 2, kind: input, shape index: {}]
  %s3 = inlined_call_operand.vmem [shape: bf16[128,128], index: 3, kind: output, shape index: {0}]
  %s4 = inlined_call_operand.vmem [shape: f32[8,128], index: 4, kind: output, shape index: {1}]
  %s5 = inlined_call_operand.vmem [shape: f32[8,128], index: 5, kind: output, shape index: {2}]
  %6 = xla_tuple %s3, %s4, %s5
  %s7 = sld [smem:[#allocation0]]
  $region46: #{dcgan_d_forward.6} parent=0
    _
  %s9 = ssub.s32 1, %s7
  %s10 = scalar_select 0, %s9, %s7
  // Predicated region
  $region2: #{dcgan_d_forward.6} parent=0 // pred_check
    _
  $region3: #{dcgan_d_forward.6} parent=0 // pred_check_branch
    %12 = sbr.rel (0) target = $region5
  $region4: #{dcgan_d_forward.6} parent=0 // pred_region
    _
  $region5: #{dcgan_d_forward.6} parent=0 // pred_fallthru
    _
  // Predicated region
  $region6: #{dcgan_d_forward.6} parent=0 // pred_check
    _
  $region7: #{dcgan_d_forward.6} parent=0 // pred_check_branch
    %14 = sbr.rel (0) target = $region9
  $region8: #{dcgan_d_forward.6} parent=0 // pred_region
    _
  $region9: #{dcgan_d_forward.6} parent=0 // pred_fallthru
    _
  // Predicated region
  $region10: #{dcgan_d_forward.6} parent=0 // pred_check
    _
  $region11: #{dcgan_d_forward.6} parent=0 // pred_check_branch
    %16 = sbr.rel (0) target = $region13
  $region12: #{dcgan_d_forward.6} parent=0 // pred_region
    _
  $region13: #{dcgan_d_forward.6} parent=0 // pred_fallthru
    _
  %p18 = scmp.eq.s32.totalorder 0, 0
  // Predicated region
  $region14: #{dcgan_d_forward.6} parent=0 // pred_check
    %p19 = pneg %p18
  $region15: #{dcgan_d_forward.6} parent=0 // pred_check_branch
    %21 = sbr.rel (%p19) target = $region17
  $region16: #{dcgan_d_forward.6} parent=0 // pred_region
    %22 = vst [vmem:[#allocation2] sm:$0xff] 0.0
    %23 = vst [vmem:[#allocation2 + $0x8] sm:$0xff] 0.0
    %24 = vst [vmem:[#allocation2 + $0x10] sm:$0xff] 0.0
    %25 = vst [vmem:[#allocation2 + $0x18] sm:$0xff] 0.0
    %26 = vst [vmem:[#allocation2 + $0x20] sm:$0xff] 0.0
    %27 = vst [vmem:[#allocation2 + $0x28] sm:$0xff] 0.0
    %28 = vst [vmem:[#allocation2 + $0x30] sm:$0xff] 0.0
    %29 = vst [vmem:[#allocation2 + $0x38] sm:$0xff] 0.0
    %30 = vst [vmem:[#allocation2 + $0x40] sm:$0xff] 0.0
    %31 = vst [vmem:[#allocation2 + $0x48] sm:$0xff] 0.0
    %32 = vst [vmem:[#allocation2 + $0x50] sm:$0xff] 0.0
    %33 = vst [vmem:[#allocation2 + $0x58] sm:$0xff] 0.0
    %34 = vst [vmem:[#allocation2 + $0x60] sm:$0xff] 0.0
    %35 = vst [vmem:[#allocation2 + $0x68] sm:$0xff] 0.0
    %36 = vst [vmem:[#allocation2 + $0x70] sm:$0xff] 0.0
    %37 = vst [vmem:[#allocation2 + $0x78] sm:$0xff] 0.0
  $region17: #{dcgan_d_forward.6} parent=0 // pred_fallthru
    _
  %v38 = vld [vmem:[#allocation2] sm:$0xff]
  %v39 = vld [vmem:[#allocation2 + $0x8] sm:$0xff]
  %v40 = vld [vmem:[#allocation2 + $0x10] sm:$0xff]
  %v41 = vld [vmem:[#allocation2 + $0x18] sm:$0xff]
  %v42 = vld [vmem:[#allocation2 + $0x20] sm:$0xff]
  %v43 = vld [vmem:[#allocation2 + $0x28] sm:$0xff]
  %v44 = vld [vmem:[#allocation2 + $0x30] sm:$0xff]
  %v45 = vld [vmem:[#allocation2 + $0x38] sm:$0xff]
  %v46 = vld [vmem:[#allocation2 + $0x40] sm:$0xff]
  %v47 = vld [vmem:[#allocation2 + $0x48] sm:$0xff]
  %v48 = vld [vmem:[#allocation2 + $0x50] sm:$0xff]
  %v49 = vld [vmem:[#allocation2 + $0x58] sm:$0xff]
  %v50 = vld [vmem:[#allocation2 + $0x60] sm:$0xff]
  %v51 = vld [vmem:[#allocation2 + $0x68] sm:$0xff]
  %v52 = vld [vmem:[#allocation2 + $0x70] sm:$0xff]
  %v53 = vld [vmem:[#allocation2 + $0x78] sm:$0xff]
  %v54 = vld [vmem:[%s0] sm:$0xf]
  %v55 = vld [vmem:[%s0 + $0x4] sm:$0xf]
  %v56 = vld [vmem:[%s0 + $0x8] sm:$0xf]
  %v57 = vld [vmem:[%s0 + $0xc] sm:$0xf]
  %v58 = vld [vmem:[%s0 + $0x10] sm:$0xf]
  %v59 = vld [vmem:[%s0 + $0x14] sm:$0xf]
  %v60 = vld [vmem:[%s0 + $0x18] sm:$0xf]
  %v61 = vld [vmem:[%s0 + $0x1c] sm:$0xf]
  %v62 = vld [vmem:[%s0 + $0x20] sm:$0xf]
  %v63 = vld [vmem:[%s0 + $0x24] sm:$0xf]
  %v64 = vld [vmem:[%s0 + $0x28] sm:$0xf]
  %v65 = vld [vmem:[%s0 + $0x2c] sm:$0xf]
  %v66 = vld [vmem:[%s0 + $0x30] sm:$0xf]
  %v67 = vld [vmem:[%s0 + $0x34] sm:$0xf]
  %v68 = vld [vmem:[%s0 + $0x38] sm:$0xf]
  %v69 = vld [vmem:[%s0 + $0x3c] sm:$0xf]
  %v70 = vld [vmem:[%s1] sm:$0xf]
  %v71 = vld [vmem:[%s1 + $0x4] sm:$0xf]
  %v72 = vld [vmem:[%s1 + $0x8] sm:$0xf]
  %v73 = vld [vmem:[%s1 + $0xc] sm:$0xf]
  %v74 = vld [vmem:[%s1 + $0x10] sm:$0xf]
  %v75 = vld [vmem:[%s1 + $0x14] sm:$0xf]
  %v76 = vld [vmem:[%s1 + $0x18] sm:$0xf]
  %v77 = vld [vmem:[%s1 + $0x1c] sm:$0xf]
  %v78 = vld [vmem:[%s1 + $0x20] sm:$0xf]
  %v95 = vunpack.c.l.b16 %v54
  %v96 = vunpack.c.l.b16 %v55
  %v97 = vunpack.c.l.b16 %v56
  %v98 = vunpack.c.l.b16 %v57
  %v99 = vunpack.c.l.b16 %v58
  %v100 = vunpack.c.l.b16 %v59
  %v101 = vunpack.c.l.b16 %v60
  %v102 = vunpack.c.l.b16 %v61
  %v103 = vunpack.c.l.b16 %v62
  %v104 = vunpack.c.l.b16 %v63
  %v105 = vunpack.c.l.b16 %v64
  %v106 = vunpack.c.l.b16 %v65
  %v107 = vunpack.c.l.b16 %v66
  %v108 = vunpack.c.l.b16 %v67
  %v109 = vunpack.c.l.b16 %v68
  %v110 = vunpack.c.l.b16 %v69
  %v111 = vpack.c.b16 %v96, %v95
  %v112 = vpack.c.b16 %v98, %v97
  %v113 = vpack.c.b16 %v100, %v99
  %v114 = vpack.c.b16 %v102, %v101
  %v115 = vpack.c.b16 %v104, %v103
  %v116 = vpack.c.b16 %v106, %v105
  %v117 = vpack.c.b16 %v108, %v107
  %v118 = vpack.c.b16 %v110, %v109
  %v128 = vunpack.c.l.b16 %v70
  %v129 = vunpack.c.l.b16 %v71
  %v130 = vunpack.c.l.b16 %v72
  %v131 = vunpack.c.l.b16 %v73
  %v132 = vunpack.c.l.b16 %v74
  %v133 = vunpack.c.l.b16 %v75
  %v134 = vunpack.c.l.b16 %v76
  %v135 = vunpack.c.l.b16 %v77
  %v136 = vunpack.c.l.b16 %v78
  %v137 = vpack.c.b16 %v129, %v128
  %v138 = vpack.c.b16 %v131, %v130
  %v139 = vpack.c.b16 %v133, %v132
  %v140 = vpack.c.b16 %v135, %v134
  %v141 = vpack.c.b16 %v136, %v136
  %vm146 = vcmask 588800
  %v148 = vsel %vm146, %v111, 0
  %v151 = vsel %vm146, %v112, 0
  %v154 = vsel %vm146, %v113, 0
  %v157 = vsel %vm146, %v114, 0
  %v160 = vsel %vm146, %v115, 0
  %v163 = vsel %vm146, %v116, 0
  %v166 = vsel %vm146, %v117, 0
  %v169 = vsel %vm146, %v118, 0
  %vm171 = vcmask 1043456
  %v173 = vsel %vm171, %v141, 0
  %175 = vmatprep.subr.bf16.mxu0 0
  %176 = vmatpush1.bf16.msra.mxu0 %v137
  %177 = vmatprep.subr.bf16.mxu0 0
  %178 = vmatpush1.bf16.msra.mxu0 %v138
  %179 = vmatprep.subr.bf16.mxu0 0
  %180 = vmatpush1.bf16.msra.mxu0 %v139
  %181 = vmatprep.subr.bf16.mxu0 0
  %182 = vmatpush1.bf16.msra.mxu0 %v140
  %183 = vmatprep.subr.bf16.mxu0 0
  %184 = vmatpush1.bf16.msra.mxu0 %v173
  %185 = vmatprep.subr.bf16.mxu0 0
  %186 = vmatpush1.bf16.msra.mxu0 0
  %187 = vmatprep.subr.bf16.mxu0 0
  %188 = vmatpush1.bf16.msra.mxu0 0
  %189 = vmatprep.subr.bf16.mxu0 0
  %190 = vmatpush1.bf16.msra.mxu0 0
  %191 = vmatprep.subr.bf16.mxu0 0
  %192 = vmatpush1.bf16.msra.mxu0 0
  %193 = vmatprep.subr.bf16.mxu0 0
  %194 = vmatpush1.bf16.msra.mxu0 0
  %195 = vmatprep.subr.bf16.mxu0 0
  %196 = vmatpush1.bf16.msra.mxu0 0
  %197 = vmatprep.subr.bf16.mxu0 0
  %198 = vmatpush1.bf16.msra.mxu0 0
  %199 = vmatprep.subr.bf16.mxu0 0
  %200 = vmatpush1.bf16.msra.mxu0 0
  %201 = vmatprep.subr.bf16.mxu0 0
  %202 = vmatpush1.bf16.msra.mxu0 0
  %203 = vmatprep.subr.bf16.mxu0 0
  %204 = vmatpush1.bf16.msra.mxu0 0
  %205 = vmatprep.subr.bf16.mxu0 0
  %206 = vmatpush1.bf16.msra.mxu0 0
  %207 = vmatprep.mubr.bf16.mxu0 0
  %208 = vmatmul.mubr.bf16.gmra.mrb[0].mxu0 %v148
  %v209 = vpop.f32.mrb[0].mxu0
  %v210 = vadd.f32 0.0, %v209
  %v211 = vpop.f32.mrb[0].mxu0
  %v212 = vpop.f32.mrb[0].mxu0
  %v213 = vadd.f32 0.0, %v212
  %v214 = vpop.f32.mrb[0].mxu0
  %215 = vmatprep.mubr.bf16.mxu0 0
  %216 = vmatmul.mubr.bf16.gmra.mrb[0].mxu0 %v151
  %v217 = vpop.f32.mrb[0].mxu0
  %v218 = vadd.f32 0.0, %v217
  %v219 = vpop.f32.mrb[0].mxu0
  %v220 = vpop.f32.mrb[0].mxu0
  %v221 = vadd.f32 0.0, %v220
  %v222 = vpop.f32.mrb[0].mxu0
  %223 = vmatprep.mubr.bf16.mxu0 0
  %224 = vmatmul.mubr.bf16.gmra.mrb[0].mxu0 %v154
  %v225 = vpop.f32.mrb[0].mxu0
  %v226 = vadd.f32 0.0, %v225
  %v227 = vpop.f32.mrb[0].mxu0
  %v228 = vpop.f32.mrb[0].mxu0
  %v229 = vadd.f32 0.0, %v228
  %v230 = vpop.f32.mrb[0].mxu0
  %231 = vmatprep.mubr.bf16.mxu0 0
  %232 = vmatmul.mubr.bf16.gmra.mrb[0].mxu0 %v157
  %v233 = vpop.f32.mrb[0].mxu0
  %v234 = vadd.f32 0.0, %v233
  %v235 = vpop.f32.mrb[0].mxu0
  %v236 = vpop.f32.mrb[0].mxu0
  %v237 = vadd.f32 0.0, %v236
  %v238 = vpop.f32.mrb[0].mxu0
  %239 = vmatprep.mubr.bf16.mxu0 0
  %240 = vmatmul.mubr.bf16.gmra.mrb[0].mxu0 %v160
  %v241 = vpop.f32.mrb[0].mxu0
  %v242 = vadd.f32 0.0, %v241
  %v243 = vpop.f32.mrb[0].mxu0
  %v244 = vpop.f32.mrb[0].mxu0
  %v245 = vadd.f32 0.0, %v244
  %v246 = vpop.f32.mrb[0].mxu0
  %247 = vmatprep.mubr.bf16.mxu0 0
  %248 = vmatmul.mubr.bf16.gmra.mrb[0].mxu0 %v163
  %v249 = vpop.f32.mrb[0].mxu0
  %v250 = vadd.f32 0.0, %v249
  %v251 = vpop.f32.mrb[0].mxu0
  %v252 = vpop.f32.mrb[0].mxu0
  %v253 = vadd.f32 0.0, %v252
  %v254 = vpop.f32.mrb[0].mxu0
  %255 = vmatprep.mubr.bf16.mxu0 0
  %256 = vmatmul.mubr.bf16.gmra.mrb[0].mxu0 %v166
  %v257 = vpop.f32.mrb[0].mxu0
  %v258 = vadd.f32 0.0, %v257
  %v259 = vpop.f32.mrb[0].mxu0
  %v260 = vpop.f32.mrb[0].mxu0
  %v261 = vadd.f32 0.0, %v260
  %v262 = vpop.f32.mrb[0].mxu0
  %263 = vmatprep.mubr.bf16.mxu0 0
  %264 = vmatmul.mubr.bf16.gmra.mrb[0].mxu0 %v169
  %v265 = vpop.f32.mrb[0].mxu0
  %v266 = vadd.f32 0.0, %v265
  %v267 = vpop.f32.mrb[0].mxu0
  %v268 = vpop.f32.mrb[0].mxu0
  %v269 = vadd.f32 0.0, %v268
  %v270 = vpop.f32.mrb[0].mxu0
  %271 = vdwg.mxu0
  %v272 = vadd.f32 %v38, %v210
  %v273 = vadd.f32 %v39, %v213
  %v274 = vadd.f32 %v40, %v218
  %v275 = vadd.f32 %v41, %v221
  %v276 = vadd.f32 %v42, %v226
  %v277 = vadd.f32 %v43, %v229
  %v278 = vadd.f32 %v44, %v234
  %v279 = vadd.f32 %v45, %v237
  %v280 = vadd.f32 %v46, %v242
  %v281 = vadd.f32 %v47, %v245
  %v282 = vadd.f32 %v48, %v250
  %v283 = vadd.f32 %v49, %v253
  %v284 = vadd.f32 %v50, %v258
  %v285 = vadd.f32 %v51, %v261
  %v286 = vadd.f32 %v52, %v266
  %v287 = vadd.f32 %v53, %v269
  %288 = vst [vmem:[#allocation2] sm:$0xff] %v272
  %289 = vst [vmem:[#allocation2 + $0x8] sm:$0xff] %v273
  %290 = vst [vmem:[#allocation2 + $0x10] sm:$0xff] %v274
  %291 = vst [vmem:[#allocation2 + $0x18] sm:$0xff] %v275
  %292 = vst [vmem:[#allocation2 + $0x20] sm:$0xff] %v276
  %293 = vst [vmem:[#allocation2 + $0x28] sm:$0xff] %v277
  %294 = vst [vmem:[#allocation2 + $0x30] sm:$0xff] %v278
  %295 = vst [vmem:[#allocation2 + $0x38] sm:$0xff] %v279
  %296 = vst [vmem:[#allocation2 + $0x40] sm:$0xff] %v280
  %297 = vst [vmem:[#allocation2 + $0x48] sm:$0xff] %v281
  %298 = vst [vmem:[#allocation2 + $0x50] sm:$0xff] %v282
  %299 = vst [vmem:[#allocation2 + $0x58] sm:$0xff] %v283
  %300 = vst [vmem:[#allocation2 + $0x60] sm:$0xff] %v284
  %301 = vst [vmem:[#allocation2 + $0x68] sm:$0xff] %v285
  %302 = vst [vmem:[#allocation2 + $0x70] sm:$0xff] %v286
  %303 = vst [vmem:[#allocation2 + $0x78] sm:$0xff] %v287
  // Predicated region
  $region18: #{dcgan_d_forward.6} parent=0 // pred_check
    %p304 = pneg %p18
  $region19: #{dcgan_d_forward.6} parent=0 // pred_check_branch
    %306 = sbr.rel (%p304) target = $region21
  $region20: #{dcgan_d_forward.6} parent=0 // pred_region
    %v307 = vld [vmem:[#allocation2] sm:$0xff]
    %v308 = vld [vmem:[#allocation2 + $0x8] sm:$0xff]
    %v309 = vld [vmem:[#allocation2 + $0x10] sm:$0xff]
    %v310 = vld [vmem:[#allocation2 + $0x18] sm:$0xff]
    %v311 = vld [vmem:[#allocation2 + $0x20] sm:$0xff]
    %v312 = vld [vmem:[#allocation2 + $0x28] sm:$0xff]
    %v313 = vld [vmem:[#allocation2 + $0x30] sm:$0xff]
    %v314 = vld [vmem:[#allocation2 + $0x38] sm:$0xff]
    %v315 = vld [vmem:[#allocation2 + $0x40] sm:$0xff]
    %v316 = vld [vmem:[#allocation2 + $0x48] sm:$0xff]
    %v317 = vld [vmem:[#allocation2 + $0x50] sm:$0xff]
    %v318 = vld [vmem:[#allocation2 + $0x58] sm:$0xff]
    %v319 = vld [vmem:[#allocation2 + $0x60] sm:$0xff]
    %v320 = vld [vmem:[#allocation2 + $0x68] sm:$0xff]
    %v321 = vld [vmem:[#allocation2 + $0x70] sm:$0xff]
    %v322 = vld [vmem:[#allocation2 + $0x78] sm:$0xff]
    %v323 = vld [vmem:[%s2] sm:$0x1]
    %v325 = vlaneseq
    %v326 = vshrl.u32 %v325, 7
    %v327 = vsub.s32 0, %v326
    %v328 = vrot.slane %v323, %v327
    %v330 = vadd.f32 %v307, %v328
    %v331 = vadd.f32 %v308, %v328
    %v332 = vadd.f32 %v309, %v328
    %v333 = vadd.f32 %v310, %v328
    %v334 = vadd.f32 %v311, %v328
    %v335 = vadd.f32 %v312, %v328
    %v336 = vadd.f32 %v313, %v328
    %v337 = vadd.f32 %v314, %v328
    %v338 = vadd.f32 %v315, %v328
    %v339 = vadd.f32 %v316, %v328
    %v340 = vadd.f32 %v317, %v328
    %v341 = vadd.f32 %v318, %v328
    %v342 = vadd.f32 %v319, %v328
    %v343 = vadd.f32 %v320, %v328
    %v344 = vadd.f32 %v321, %v328
    %v345 = vadd.f32 %v322, %v328
    %v346 = vpack.c.bf16 %v331, %v330
    %v347 = vpack.c.bf16 %v333, %v332
    %v348 = vpack.c.bf16 %v335, %v334
    %v349 = vpack.c.bf16 %v337, %v336
    %v350 = vpack.c.bf16 %v339, %v338
    %v351 = vpack.c.bf16 %v341, %v340
    %v352 = vpack.c.bf16 %v343, %v342
    %v353 = vpack.c.bf16 %v345, %v344
    %v362 = vunpack.c.l.b16 %v346
    %v363 = vunpack.c.h.b16 %v346
    %v364 = vunpack.c.l.b16 %v347
    %v365 = vunpack.c.h.b16 %v347
    %v366 = vunpack.c.l.b16 %v348
    %v367 = vunpack.c.h.b16 %v348
    %v368 = vunpack.c.l.b16 %v349
    %v369 = vunpack.c.h.b16 %v349
    %v370 = vunpack.c.l.b16 %v350
    %v371 = vunpack.c.h.b16 %v350
    %v372 = vunpack.c.l.b16 %v351
    %v373 = vunpack.c.h.b16 %v351
    %v374 = vunpack.c.l.b16 %v352
    %v375 = vunpack.c.h.b16 %v352
    %v376 = vunpack.c.l.b16 %v353
    %v377 = vunpack.c.h.b16 %v353
    %v378 = vpack.c.b16 %v362, %v362
    %v379 = vpack.c.b16 %v363, %v363
    %v380 = vpack.c.b16 %v364, %v364
    %v381 = vpack.c.b16 %v365, %v365
    %v382 = vpack.c.b16 %v366, %v366
    %v383 = vpack.c.b16 %v367, %v367
    %v384 = vpack.c.b16 %v368, %v368
    %v385 = vpack.c.b16 %v369, %v369
    %v386 = vpack.c.b16 %v370, %v370
    %v387 = vpack.c.b16 %v371, %v371
    %v388 = vpack.c.b16 %v372, %v372
    %v389 = vpack.c.b16 %v373, %v373
    %v390 = vpack.c.b16 %v374, %v374
    %v391 = vpack.c.b16 %v375, %v375
    %v392 = vpack.c.b16 %v376, %v376
    %v393 = vpack.c.b16 %v377, %v377
    %410 = vst [vmem:[%s3] sm:$0xf] %v378
    %411 = vst [vmem:[%s3 + $0x4] sm:$0xf] %v379
    %412 = vst [vmem:[%s3 + $0x8] sm:$0xf] %v380
    %413 = vst [vmem:[%s3 + $0xc] sm:$0xf] %v381
    %414 = vst [vmem:[%s3 + $0x10] sm:$0xf] %v382
    %415 = vst [vmem:[%s3 + $0x14] sm:$0xf] %v383
    %416 = vst [vmem:[%s3 + $0x18] sm:$0xf] %v384
    %417 = vst [vmem:[%s3 + $0x1c] sm:$0xf] %v385
    %418 = vst [vmem:[%s3 + $0x20] sm:$0xf] %v386
    %419 = vst [vmem:[%s3 + $0x24] sm:$0xf] %v387
    %420 = vst [vmem:[%s3 + $0x28] sm:$0xf] %v388
    %421 = vst [vmem:[%s3 + $0x2c] sm:$0xf] %v389
    %422 = vst [vmem:[%s3 + $0x30] sm:$0xf] %v390
    %423 = vst [vmem:[%s3 + $0x34] sm:$0xf] %v391
    %424 = vst [vmem:[%s3 + $0x38] sm:$0xf] %v392
    %425 = vst [vmem:[%s3 + $0x3c] sm:$0xf] %v393
    %v426 = vadd.f32 %v330, %v331
    %v427 = vadd.f32 %v426, %v332
    %v428 = vadd.f32 %v427, %v333
    %v429 = vadd.f32 %v428, %v334
    %v430 = vadd.f32 %v429, %v335
    %v431 = vadd.f32 %v430, %v336
    %v432 = vadd.f32 %v431, %v337
    %v433 = vadd.f32 %v432, %v338
    %v434 = vadd.f32 %v433, %v339
    %v435 = vadd.f32 %v434, %v340
    %v436 = vadd.f32 %v435, %v341
    %v437 = vadd.f32 %v436, %v342
    %v438 = vadd.f32 %v437, %v343
    %v439 = vadd.f32 %v438, %v344
    %v440 = vadd.f32 %v439, %v345
    %v441 = vrot.slane %v440, 4
    %v442 = vadd.f32 %v440, %v441
    %v443 = vrot.slane %v442, 2
    %v444 = vadd.f32 %v442, %v443
    %v445 = vrot.slane %v444, 1
    %v446 = vadd.f32 %v444, %v445
    %v447 = vmul.f32 %v330, %v330
    %v448 = vmul.f32 %v331, %v331
    %v449 = vmul.f32 %v332, %v332
    %v450 = vmul.f32 %v333, %v333
    %v451 = vmul.f32 %v334, %v334
    %v452 = vmul.f32 %v335, %v335
    %v453 = vmul.f32 %v336, %v336
    %v454 = vmul.f32 %v337, %v337
    %v455 = vmul.f32 %v338, %v338
    %v456 = vmul.f32 %v339, %v339
    %v457 = vmul.f32 %v340, %v340
    %v458 = vmul.f32 %v341, %v341
    %v459 = vmul.f32 %v342, %v342
    %v460 = vmul.f32 %v343, %v343
    %v461 = vmul.f32 %v344, %v344
    %v462 = vmul.f32 %v345, %v345
    %v463 = vadd.f32 %v447, %v448
    %v464 = vadd.f32 %v463, %v449
    %v465 = vadd.f32 %v464, %v450
    %v466 = vadd.f32 %v465, %v451
    %v467 = vadd.f32 %v466, %v452
    %v468 = vadd.f32 %v467, %v453
    %v469 = vadd.f32 %v468, %v454
    %v470 = vadd.f32 %v469, %v455
    %v471 = vadd.f32 %v470, %v456
    %v472 = vadd.f32 %v471, %v457
    %v473 = vadd.f32 %v472, %v458
    %v474 = vadd.f32 %v473, %v459
    %v475 = vadd.f32 %v474, %v460
    %v476 = vadd.f32 %v475, %v461
    %v477 = vadd.f32 %v476, %v462
    %v478 = vrot.slane %v477, 4
    %v479 = vadd.f32 %v477, %v478
    %v480 = vrot.slane %v479, 2
    %v481 = vadd.f32 %v479, %v480
    %v482 = vrot.slane %v481, 1
    %v483 = vadd.f32 %v481, %v482
    %484 = vst [vmem:[%s4] sm:$0xff] %v446
    %485 = vst [vmem:[%s5] sm:$0xff] %v483
  $region21: #{dcgan_d_forward.6} parent=0 // pred_fallthru
    _
  // Predicated region
  $region22: #{dcgan_d_forward.6} parent=0 // pred_check
    _
  $region23: #{dcgan_d_forward.6} parent=0 // pred_check_branch
    %487 = sbr.rel (0) target = $region25
  $region24: #{dcgan_d_forward.6} parent=0 // pred_region
    _
  $region25: #{dcgan_d_forward.6} parent=0 // pred_fallthru
    _
  // Predicated region
  $region26: #{dcgan_d_forward.6} parent=0 // pred_check
    _
  $region27: #{dcgan_d_forward.6} parent=0 // pred_check_branch
    %489 = sbr.rel (0) target = $region29
  $region28: #{dcgan_d_forward.6} parent=0 // pred_region
    _
  $region29: #{dcgan_d_forward.6} parent=0 // pred_fallthru
    _
  // Predicated region
  $region30: #{dcgan_d_forward.6} parent=0 // pred_check
    _
  $region31: #{dcgan_d_forward.6} parent=0 // pred_check_branch
    %491 = sbr.rel (0) target = $region33
  $region32: #{dcgan_d_forward.6} parent=0 // pred_region
    _
  $region33: #{dcgan_d_forward.6} parent=0 // pred_fallthru
    _
  // Predicated region
  $region34: #{dcgan_d_forward.6} parent=0 // pred_check
    _
  $region35: #{dcgan_d_forward.6} parent=0 // pred_check_branch
    %493 = sbr.rel (0) target = $region37
  $region36: #{dcgan_d_forward.6} parent=0 // pred_region
    _
  $region37: #{dcgan_d_forward.6} parent=0 // pred_fallthru
    _
  // Predicated region
  $region38: #{dcgan_d_forward.6} parent=0 // pred_check
    _
  $region39: #{dcgan_d_forward.6} parent=0 // pred_check_branch
    %495 = sbr.rel (0) target = $region41
  $region40: #{dcgan_d_forward.6} parent=0 // pred_region
    _
  $region41: #{dcgan_d_forward.6} parent=0 // pred_fallthru
    _
  // Predicated region
  $region42: #{dcgan_d_forward.6} parent=0 // pred_check
    _
  $region43: #{dcgan_d_forward.6} parent=0 // pred_check_branch
    %497 = sbr.rel (0) target = $region45
  $region44: #{dcgan_d_forward.6} parent=0 // pred_region
    _
  $region45: #{dcgan_d_forward.6} parent=0 // pred_fallthru
    _

// kernel: dcgan_d_forward.9
$region0: #{dcgan_d_forward.9}
  #allocation0 [shape = 'u32[]', space=smem, size = 0x4, offset = 0x4, fixed_abs, tag = 'smem constant byte address 0x4 - core index']
  #allocation1 [shape = 'u32[144,128]{1,0:T(1,128)}', space=vmem, size = 0x12000, scoped, tag = 'internal scratch']
  %s0 = inlined_call_operand.vmem [shape: bf16[32,128], index: 0, kind: input, shape index: {}]
  %s1 = inlined_call_operand.vmem [shape: f32[1,128], index: 1, kind: input, shape index: {}]
  %s2 = inlined_call_operand.vmem [shape: f32[1,128], index: 2, kind: input, shape index: {}]
  %s3 = inlined_call_operand.vmem [shape: bf16[32,128], index: 3, kind: output, shape index: {}]
  %s4 = sld [smem:[#allocation0]]
  $region22: #{dcgan_d_forward.9} parent=0
    _
  %s6 = ssub.s32 1, %s4
  %s7 = scalar_select 0, %s6, %s4
  // Predicated region
  $region2: #{dcgan_d_forward.9} parent=0 // pred_check
    _
  $region3: #{dcgan_d_forward.9} parent=0 // pred_check_branch
    %9 = sbr.rel (0) target = $region5
  $region4: #{dcgan_d_forward.9} parent=0 // pred_region
    _
  $region5: #{dcgan_d_forward.9} parent=0 // pred_fallthru
    _
  // Predicated region
  $region6: #{dcgan_d_forward.9} parent=0 // pred_check
    _
  $region7: #{dcgan_d_forward.9} parent=0 // pred_check_branch
    %11 = sbr.rel (0) target = $region9
  $region8: #{dcgan_d_forward.9} parent=0 // pred_region
    _
  $region9: #{dcgan_d_forward.9} parent=0 // pred_fallthru
    _
  // Predicated region
  $region10: #{dcgan_d_forward.9} parent=0 // pred_check
    _
  $region11: #{dcgan_d_forward.9} parent=0 // pred_check_branch
    %13 = sbr.rel (0) target = $region13
  $region12: #{dcgan_d_forward.9} parent=0 // pred_region
    _
  $region13: #{dcgan_d_forward.9} parent=0 // pred_fallthru
    _
  %v14 = vld [vmem:[%s0] sm:$0xf]
  %v15 = vld [vmem:[%s0 + $0x4] sm:$0xf]
  %v16 = vld [vmem:[%s0 + $0x8] sm:$0xf]
  %v17 = vld [vmem:[%s0 + $0xc] sm:$0xf]
  %v18 = vunpack.c.l.bf16 %v14
  %v19 = vunpack.c.l.bf16 %v15
  %v20 = vunpack.c.l.bf16 %v16
  %v21 = vunpack.c.l.bf16 %v17
  %v22 = vld [vmem:[%s1] sm:$0x1]
  %v24 = vlaneseq
  %v25 = vshrl.u32 %v24, 7
  %v26 = vsub.s32 0, %v25
  %v27 = vrot.slane %v22, %v26
  %v29 = vmul.f32 %v18, %v27
  %v30 = vmul.f32 %v19, %v27
  %v31 = vmul.f32 %v20, %v27
  %v32 = vmul.f32 %v21, %v27
  %v33 = vld [vmem:[%s2] sm:$0x1]
  %v35 = vlaneseq
  %v36 = vshrl.u32 %v35, 7
  %v37 = vsub.s32 0, %v36
  %v38 = vrot.slane %v33, %v37
  %v40 = vadd.f32 %v29, %v38
  %v41 = vadd.f32 %v30, %v38
  %v42 = vadd.f32 %v31, %v38
  %v43 = vadd.f32 %v32, %v38
  %vm44 = vcmp.ge.f32.partialorder %v40, 0.0
  %vm45 = vcmp.ge.f32.partialorder %v41, 0.0
  %vm46 = vcmp.ge.f32.partialorder %v42, 0.0
  %vm47 = vcmp.ge.f32.partialorder %v43, 0.0
  %v48 = vmul.f32 %v40, 0.2
  %v49 = vmul.f32 %v41, 0.2
  %v50 = vmul.f32 %v42, 0.2
  %v51 = vmul.f32 %v43, 0.2
  %v52 = vsel %vm44, %v40, %v48
  %v53 = vsel %vm45, %v41, %v49
  %v54 = vsel %vm46, %v42, %v50
  %v55 = vsel %vm47, %v43, %v51
  %v56 = vpack.c.bf16 %v53, %v52
  %v57 = vpack.c.bf16 %v55, %v54
  %v60 = vunpack.c.l.b16 %v56
  %v61 = vunpack.c.h.b16 %v56
  %v62 = vunpack.c.l.b16 %v57
  %v63 = vunpack.c.h.b16 %v57
  %v64 = vpack.c.b16 %v60, %v60
  %v65 = vpack.c.b16 %v61, %v61
  %v66 = vpack.c.b16 %v62, %v62
  %v67 = vpack.c.b16 %v63, %v63
  %72 = vst [vmem:[%s3] sm:$0xf] %v64
  %73 = vst [vmem:[%s3 + $0x4] sm:$0xf] %v65
  %74 = vst [vmem:[%s3 + $0x8] sm:$0xf] %v66
  %75 = vst [vmem:[%s3 + $0xc] sm:$0xf] %v67
  // Predicated region
  $region14: #{dcgan_d_forward.9} parent=0 // pred_check
    _
  $region15: #{dcgan_d_forward.9} parent=0 // pred_check_branch
    %77 = sbr.rel (0) target = $region17
  $region16: #{dcgan_d_forward.9} parent=0 // pred_region
    _
  $region17: #{dcgan_d_forward.9} parent=0 // pred_fallthru
    _
  // Predicated region
  $region18: #{dcgan_d_forward.9} parent=0 // pred_check
    _
  $region19: #{dcgan_d_forward.9} parent=0 // pred_check_branch
    %79 = sbr.rel (0) target = $region21
  $region20: #{dcgan_d_forward.9} parent=0 // pred_region
    _
  $region21: #{dcgan_d_forward.9} parent=0 // pred_fallthru
    _

// kernel: dcgan_d_forward.8
$region0: #{dcgan_d_forward.8}
  #allocation0 [shape = 'u32[]', space=smem, size = 0x4, offset = 0x4, fixed_abs, tag = 'smem constant byte address 0x4 - core index']
  #allocation1 [shape = 'u32[144,128]{1,0:T(1,128)}', space=vmem, size = 0x12000, scoped, tag = 'internal scratch']
  #allocation2 [shape = 'f32[32,128]{1,0:T(8,128)}', space=vmem, size = 0x4000, scoped, tag = 'scratch operand']
  %s0 = inlined_call_operand.vmem [shape: bf16[32,128], index: 0, kind: input, shape index: {}]
  %s1 = inlined_call_operand.vmem [shape: bf16[128,128], index: 1, kind: input, shape index: {}]
  %s2 = inlined_call_operand.vmem [shape: f32[1,128], index: 2, kind: input, shape index: {}]
  %s3 = inlined_call_operand.vmem [shape: bf16[32,128], index: 3, kind: output, shape index: {0}]
  %s4 = inlined_call_operand.vmem [shape: f32[8,128], index: 4, kind: output, shape index: {1}]
  %s5 = inlined_call_operand.vmem [shape: f32[8,128], index: 5, kind: output, shape index: {2}]
  %6 = xla_tuple %s3, %s4, %s5
  %s7 = sld [smem:[#allocation0]]
  $region46: #{dcgan_d_forward.8} parent=0
    _
  %s9 = ssub.s32 1, %s7
  %s10 = scalar_select 0, %s9, %s7
  // Predicated region
  $region2: #{dcgan_d_forward.8} parent=0 // pred_check
    _
  $region3: #{dcgan_d_forward.8} parent=0 // pred_check_branch
    %12 = sbr.rel (0) target = $region5
  $region4: #{dcgan_d_forward.8} parent=0 // pred_region
    _
  $region5: #{dcgan_d_forward.8} parent=0 // pred_fallthru
    _
  // Predicated region
  $region6: #{dcgan_d_forward.8} parent=0 // pred_check
    _
  $region7: #{dcgan_d_forward.8} parent=0 // pred_check_branch
    %14 = sbr.rel (0) target = $region9
  $region8: #{dcgan_d_forward.8} parent=0 // pred_region
    _
  $region9: #{dcgan_d_forward.8} parent=0 // pred_fallthru
    _
  // Predicated region
  $region10: #{dcgan_d_forward.8} parent=0 // pred_check
    _
  $region11: #{dcgan_d_forward.8} parent=0 // pred_check_branch
    %16 = sbr.rel (0) target = $region13
  $region12: #{dcgan_d_forward.8} parent=0 // pred_region
    _
  $region13: #{dcgan_d_forward.8} parent=0 // pred_fallthru
    _
  %p18 = scmp.eq.s32.totalorder 0, 0
  // Predicated region
  $region14: #{dcgan_d_forward.8} parent=0 // pred_check
    %p19 = pneg %p18
  $region15: #{dcgan_d_forward.8} parent=0 // pred_check_branch
    %21 = sbr.rel (%p19) target = $region17
  $region16: #{dcgan_d_forward.8} parent=0 // pred_region
    %22 = vst [vmem:[#allocation2] sm:$0xff] 0.0
    %23 = vst [vmem:[#allocation2 + $0x8] sm:$0xff] 0.0
    %24 = vst [vmem:[#allocation2 + $0x10] sm:$0xff] 0.0
    %25 = vst [vmem:[#allocation2 + $0x18] sm:$0xff] 0.0
  $region17: #{dcgan_d_forward.8} parent=0 // pred_fallthru
    _
  %v26 = vld [vmem:[#allocation2] sm:$0xff]
  %v27 = vld [vmem:[#allocation2 + $0x8] sm:$0xff]
  %v28 = vld [vmem:[#allocation2 + $0x10] sm:$0xff]
  %v29 = vld [vmem:[#allocation2 + $0x18] sm:$0xff]
  %v30 = vld [vmem:[%s0] sm:$0xf]
  %v31 = vld [vmem:[%s0 + $0x4] sm:$0xf]
  %v32 = vld [vmem:[%s0 + $0x8] sm:$0xf]
  %v33 = vld [vmem:[%s0 + $0xc] sm:$0xf]
  %v34 = vld [vmem:[%s1] sm:$0xf]
  %v35 = vld [vmem:[%s1 + $0x4] sm:$0xf]
  %v36 = vld [vmem:[%s1 + $0x8] sm:$0xf]
  %v37 = vld [vmem:[%s1 + $0xc] sm:$0xf]
  %v38 = vld [vmem:[%s1 + $0x10] sm:$0xf]
  %v39 = vld [vmem:[%s1 + $0x14] sm:$0xf]
  %v40 = vld [vmem:[%s1 + $0x18] sm:$0xf]
  %v41 = vld [vmem:[%s1 + $0x1c] sm:$0xf]
  %v42 = vld [vmem:[%s1 + $0x20] sm:$0xf]
  %v43 = vld [vmem:[%s1 + $0x24] sm:$0xf]
  %v44 = vld [vmem:[%s1 + $0x28] sm:$0xf]
  %v45 = vld [vmem:[%s1 + $0x2c] sm:$0xf]
  %v46 = vld [vmem:[%s1 + $0x30] sm:$0xf]
  %v47 = vld [vmem:[%s1 + $0x34] sm:$0xf]
  %v48 = vld [vmem:[%s1 + $0x38] sm:$0xf]
  %v49 = vld [vmem:[%s1 + $0x3c] sm:$0xf]
  %v54 = vunpack.c.l.b16 %v30
  %v55 = vunpack.c.l.b16 %v31
  %v56 = vunpack.c.l.b16 %v32
  %v57 = vunpack.c.l.b16 %v33
  %v58 = vpack.c.b16 %v55, %v54
  %v59 = vpack.c.b16 %v57, %v56
  %v78 = vunpack.c.l.b16 %v34
  %v79 = vunpack.c.l.b16 %v35
  %v80 = vunpack.c.l.b16 %v36
  %v81 = vunpack.c.l.b16 %v37
  %v82 = vunpack.c.l.b16 %v38
  %v83 = vunpack.c.l.b16 %v39
  %v84 = vunpack.c.l.b16 %v40
  %v85 = vunpack.c.l.b16 %v41
  %v86 = vunpack.c.l.b16 %v42
  %v87 = vunpack.c.l.b16 %v43
  %v88 = vunpack.c.l.b16 %v44
  %v89 = vunpack.c.l.b16 %v45
  %v90 = vunpack.c.l.b16 %v46
  %v91 = vunpack.c.l.b16 %v47
  %v92 = vunpack.c.l.b16 %v48
  %v93 = vunpack.c.l.b16 %v49
  %v94 = vpack.c.b16 %v79, %v78
  %v95 = vpack.c.b16 %v81, %v80
  %v96 = vpack.c.b16 %v83, %v82
  %v97 = vpack.c.b16 %v85, %v84
  %v98 = vpack.c.b16 %v87, %v86
  %v99 = vpack.c.b16 %v89, %v88
  %v100 = vpack.c.b16 %v91, %v90
  %v101 = vpack.c.b16 %v93, %v92
  %110 = vmatprep.subr.bf16.mxu0 0
  %111 = vmatpush1.bf16.msra.mxu0 %v94
  %112 = vmatprep.subr.bf16.mxu0 0
  %113 = vmatpush1.bf16.msra.mxu0 %v95
  %114 = vmatprep.subr.bf16.mxu0 0
  %115 = vmatpush1.bf16.msra.mxu0 %v96
  %116 = vmatprep.subr.bf16.mxu0 0
  %117 = vmatpush1.bf16.msra.mxu0 %v97
  %118 = vmatprep.subr.bf16.mxu0 0
  %119 = vmatpush1.bf16.msra.mxu0 %v98
  %120 = vmatprep.subr.bf16.mxu0 0
  %121 = vmatpush1.bf16.msra.mxu0 %v99
  %122 = vmatprep.subr.bf16.mxu0 0
  %123 = vmatpush1.bf16.msra.mxu0 %v100
  %124 = vmatprep.subr.bf16.mxu0 0
  %125 = vmatpush1.bf16.msra.mxu0 %v101
  %126 = vmatprep.subr.bf16.mxu0 0
  %127 = vmatpush1.bf16.msra.mxu0 0
  %128 = vmatprep.subr.bf16.mxu0 0
  %129 = vmatpush1.bf16.msra.mxu0 0
  %130 = vmatprep.subr.bf16.mxu0 0
  %131 = vmatpush1.bf16.msra.mxu0 0
  %132 = vmatprep.subr.bf16.mxu0 0
  %133 = vmatpush1.bf16.msra.mxu0 0
  %134 = vmatprep.subr.bf16.mxu0 0
  %135 = vmatpush1.bf16.msra.mxu0 0
  %136 = vmatprep.subr.bf16.mxu0 0
  %137 = vmatpush1.bf16.msra.mxu0 0
  %138 = vmatprep.subr.bf16.mxu0 0
  %139 = vmatpush1.bf16.msra.mxu0 0
  %140 = vmatprep.subr.bf16.mxu0 0
  %141 = vmatpush1.bf16.msra.mxu0 0
  %142 = vmatprep.mubr.bf16.mxu0 0
  %143 = vmatmul.mubr.bf16.gmra.mrb[0].mxu0 %v58
  %v144 = vpop.f32.mrb[0].mxu0
  %v145 = vadd.f32 0.0, %v144
  %v146 = vpop.f32.mrb[0].mxu0
  %v147 = vpop.f32.mrb[0].mxu0
  %v148 = vadd.f32 0.0, %v147
  %v149 = vpop.f32.mrb[0].mxu0
  %150 = vmatprep.mubr.bf16.mxu0 0
  %151 = vmatmul.mubr.bf16.gmra.mrb[0].mxu0 %v59
  %v152 = vpop.f32.mrb[0].mxu0
  %v153 = vadd.f32 0.0, %v152
  %v154 = vpop.f32.mrb[0].mxu0
  %v155 = vpop.f32.mrb[0].mxu0
  %v156 = vadd.f32 0.0, %v155
  %v157 = vpop.f32.mrb[0].mxu0
  %158 = vdwg.mxu0
  %v159 = vadd.f32 %v26, %v145
  %v160 = vadd.f32 %v27, %v148
  %v161 = vadd.f32 %v28, %v153
  %v162 = vadd.f32 %v29, %v156
  %163 = vst [vmem:[#allocation2] sm:$0xff] %v159
  %164 = vst [vmem:[#allocation2 + $0x8] sm:$0xff] %v160
  %165 = vst [vmem:[#allocation2 + $0x10] sm:$0xff] %v161
  %166 = vst [vmem:[#allocation2 + $0x18] sm:$0xff] %v162
  // Predicated region
  $region18: #{dcgan_d_forward.8} parent=0 // pred_check
    %p167 = pneg %p18
  $region19: #{dcgan_d_forward.8} parent=0 // pred_check_branch
    %169 = sbr.rel (%p167) target = $region21
  $region20: #{dcgan_d_forward.8} parent=0 // pred_region
    %v170 = vld [vmem:[#allocation2] sm:$0xff]
    %v171 = vld [vmem:[#allocation2 + $0x8] sm:$0xff]
    %v172 = vld [vmem:[#allocation2 + $0x10] sm:$0xff]
    %v173 = vld [vmem:[#allocation2 + $0x18] sm:$0xff]
    %v174 = vld [vmem:[%s2] sm:$0x1]
    %v176 = vlaneseq
    %v177 = vshrl.u32 %v176, 7
    %v178 = vsub.s32 0, %v177
    %v179 = vrot.slane %v174, %v178
    %v181 = vadd.f32 %v170, %v179
    %v182 = vadd.f32 %v171, %v179
    %v183 = vadd.f32 %v172, %v179
    %v184 = vadd.f32 %v173, %v179
    %v185 = vpack.c.bf16 %v182, %v181
    %v186 = vpack.c.bf16 %v184, %v183
    %v189 = vunpack.c.l.b16 %v185
    %v190 = vunpack.c.h.b16 %v185
    %v191 = vunpack.c.l.b16 %v186
    %v192 = vunpack.c.h.b16 %v186
    %v193 = vpack.c.b16 %v189, %v189
    %v194 = vpack.c.b16 %v190, %v190
    %v195 = vpack.c.b16 %v191, %v191
    %v196 = vpack.c.b16 %v192, %v192
    %201 = vst [vmem:[%s3] sm:$0xf] %v193
    %202 = vst [vmem:[%s3 + $0x4] sm:$0xf] %v194
    %203 = vst [vmem:[%s3 + $0x8] sm:$0xf] %v195
    %204 = vst [vmem:[%s3 + $0xc] sm:$0xf] %v196
    %v205 = vadd.f32 %v181, %v182
    %v206 = vadd.f32 %v205, %v183
    %v207 = vadd.f32 %v206, %v184
    %v208 = vrot.slane %v207, 4
    %v209 = vadd.f32 %v207, %v208
    %v210 = vrot.slane %v209, 2
    %v211 = vadd.f32 %v209, %v210
    %v212 = vrot.slane %v211, 1
    %v213 = vadd.f32 %v211, %v212
    %v214 = vmul.f32 %v181, %v181
    %v215 = vmul.f32 %v182, %v182
    %v216 = vmul.f32 %v183, %v183
    %v217 = vmul.f32 %v184, %v184
    %v218 = vadd.f32 %v214, %v215
    %v219 = vadd.f32 %v218, %v216
    %v220 = vadd.f32 %v219, %v217
    %v221 = vrot.slane %v220, 4
    %v222 = vadd.f32 %v220, %v221
    %v223 = vrot.slane %v222, 2
    %v224 = vadd.f32 %v222, %v223
    %v225 = vrot.slane %v224, 1
    %v226 = vadd.f32 %v224, %v225
    %227 = vst [vmem:[%s4] sm:$0xff] %v213
    %228 = vst [vmem:[%s5] sm:$0xff] %v226
  $region21: #{dcgan_d_forward.8} parent=0 // pred_fallthru
    _
  // Predicated region
  $region22: #{dcgan_d_forward.8} parent=0 // pred_check
    _
  $region23: #{dcgan_d_forward.8} parent=0 // pred_check_branch
    %230 = sbr.rel (0) target = $region25
  $region24: #{dcgan_d_forward.8} parent=0 // pred_region
    _
  $region25: #{dcgan_d_forward.8} parent=0 // pred_fallthru
    _
  // Predicated region
  $region26: #{dcgan_d_forward.8} parent=0 // pred_check
    _
  $region27: #{dcgan_d_forward.8} parent=0 // pred_check_branch
    %232 = sbr.rel (0) target = $region29
  $region28: #{dcgan_d_forward.8} parent=0 // pred_region
    _
  $region29: #{dcgan_d_forward.8} parent=0 // pred_fallthru
    _
  // Predicated region
  $region30: #{dcgan_d_forward.8} parent=0 // pred_check
    _
  $region31: #{dcgan_d_forward.8} parent=0 // pred_check_branch
    %234 = sbr.rel (0) target = $region33
  $region32: #{dcgan_d_forward.8} parent=0 // pred_region
    _
  $region33: #{dcgan_d_forward.8} parent=0 // pred_fallthru
    _
  // Predicated region
  $region34: #{dcgan_d_forward.8} parent=0 // pred_check
    _
  $region35: #{dcgan_d_forward.8} parent=0 // pred_check_branch
    %236 = sbr.rel (0) target = $region37
  $region36: #{dcgan_d_forward.8} parent=0 // pred_region
    _
  $region37: #{dcgan_d_forward.8} parent=0 // pred_fallthru
    _
  // Predicated region
  $region38: #{dcgan_d_forward.8} parent=0 // pred_check
    _
  $region39: #{dcgan_d_forward.8} parent=0 // pred_check_branch
    %238 = sbr.rel (0) target = $region41
  $region40: #{dcgan_d_forward.8} parent=0 // pred_region
    _
  $region41: #{dcgan_d_forward.8} parent=0 // pred_fallthru
    _
  // Predicated region
  $region42: #{dcgan_d_forward.8} parent=0 // pred_check
    _
  $region43: #{dcgan_d_forward.8} parent=0 // pred_check_branch
    %240 = sbr.rel (0) target = $region45
  $region44: #{dcgan_d_forward.8} parent=0 // pred_region
    _
  $region45: #{dcgan_d_forward.8} parent=0 // pred_fallthru
    _

</llo_original>
